<compile_context>
chip_gen: v5e
topology: v5e:2x2
jax: 0.10.0
libtpu: 0.0.40
codegen_flags: <defaults>
</compile_context>

<pallas_src>
import functools

import jax
import jax.numpy as jnp
import numpy as np
from jax import lax
from jax.experimental import pallas as pl
from jax.experimental.pallas import tpu as pltpu

NEG_SLOPE = 0.2     # GATConv default negative_slope
LN_EPS = 1e-5       # torch.nn.LayerNorm default eps
MASK_VAL = -1e30    # logit value for non-edges
LANE = 128


def _round_up(v, m):
    return ((v + m - 1) // m) * m


def _layernorm(v, gamma, beta):
    mean = jnp.mean(v, axis=-1, keepdims=True)
    cent = v - mean
    var = jnp.mean(cent * cent, axis=-1, keepdims=True)
    return cent * lax.rsqrt(var + LN_EPS) * gamma + beta


def _bf16_dot(a, b):
    # bf16 MXU operands, f32 accumulation.
    return jnp.dot(a.astype(jnp.bfloat16), b, preferred_element_type=jnp.float32)


# ---------------------------------------------------------------------------
# Kernel A: once-per-stage whole-graph projection (+ optional LN/ReLU prelude)
# and both halves of the attention scores.  grid=(1,) -> runs exactly once, so
# nothing full-graph is recomputed inside the tiled attention grid.
# ---------------------------------------------------------------------------
def _project_kernel(x_ref, w_ref, b_ref, att_src_ref, att_dst_ref,
                    gamma_ref, beta_ref,
                    h_ref, a_src_ref, a_dst_ref, *, ln_relu):
    x = x_ref[...]
    if ln_relu:  # stage 2 prelude: relu(LayerNorm(x2))
        x = jnp.maximum(_layernorm(x, gamma_ref[...], beta_ref[...]), 0.0)
    h = _bf16_dot(x, w_ref[...]) + b_ref[...]              # (N, HID) f32
    h_b = h.astype(jnp.bfloat16)
    h_ref[...] = h_b
    # per-destination score on sublanes: (N, 1)
    a_dst_ref[...] = jnp.dot(h_b, att_dst_ref[...],
                             preferred_element_type=jnp.float32)
    # per-source score on lanes: (1, N)  (contract HID; no transpose needed)
    a_src_ref[...] = lax.dot_general(att_src_ref[...], h_b,
                                     (((1,), (1,)), ((), ())),
                                     preferred_element_type=jnp.float32)


# ---------------------------------------------------------------------------
# Kernel B: destination-node-tiled attention + aggregation, shared by both
# GATConv applications.  Normalization happens after the aggregation matmul.
# ---------------------------------------------------------------------------
def _attend(h_all_ref, a_src_ref, a_dst_ref, adj_ref, b_g_ref):
    e = a_dst_ref[...] + a_src_ref[...]                    # (T, N) f32 logits
    e = jnp.maximum(e, NEG_SLOPE * e)                      # leaky_relu
    e = jnp.where(adj_ref[...] != 0, e, MASK_VAL)          # int8 adjacency mask
    e = e - jnp.max(e, axis=-1, keepdims=True)
    p = jnp.exp(e)
    denom = jnp.sum(p, axis=-1, keepdims=True)             # (T, 1)
    acc = jnp.dot(p.astype(jnp.bfloat16), h_all_ref[...],
                  preferred_element_type=jnp.float32)      # (T, HID)
    return acc * pl.reciprocal(denom, approx=True) + b_g_ref[...]


def _attn_mid_kernel(h_all_ref, a_src_ref, a_dst_ref, adj_ref, b_g_ref, out_ref):
    # x2 = layers[0].conv(node_encoder(x))
    out_ref[...] = _attend(h_all_ref, a_src_ref, a_dst_ref, adj_ref, b_g_ref)


def _attn_final_kernel(h_all_ref, a_src_ref, a_dst_ref, adj_ref, b_g_ref,
                       x_res_ref, gamma_ref, beta_ref, w_out_ref, b_out_ref,
                       out_ref):
    # x3 = conv(relu(norm(x2))) + x2 ; out = lin(relu(norm(x3)))
    x3 = _attend(h_all_ref, a_src_ref, a_dst_ref, adj_ref, b_g_ref) + x_res_ref[...]
    x4 = jnp.maximum(_layernorm(x3, gamma_ref[...], beta_ref[...]), 0.0)
    out_ref[...] = _bf16_dot(x4, w_out_ref[...]) + b_out_ref[...]


@jax.jit
def gat_forward(x, adj, params):
    n, c_in = x.shape
    hid = params["w_g"].shape[0]
    c_out = params["w_out"].shape[1]
    c_pad = _round_up(c_in, LANE)
    o_pad = _round_up(c_out, LANE)
    # 128-row destination tiles lose nothing on the MXU and keep the (T, N)
    # mask/softmax intermediates small on v5e/v7x.
    tile_n = n if n <= 128 else 128
    assert n % tile_n == 0  # TODO(synk): pad ragged last destination tile.
    grid = (n // tile_n,)

    bf = jnp.bfloat16
    f32 = jnp.float32

    # ---- one-time wrapper-side layout / fusion prep -------------------------
    x_pad = jnp.pad(x, ((0, 0), (0, c_pad - c_in)))                   # lane-dense K
    adj_i8 = (adj > 0).astype(jnp.int8)                               # 1-byte mask stream
    # node_encoder folded into the first conv projection (fused in f32).
    w_fused = jnp.pad(params["w_ne"] @ params["w_g"],
                      ((0, c_pad - c_in), (0, 0))).astype(bf)
    b_fused = (params["b_ne"] @ params["w_g"]).astype(f32)
    w_g = params["w_g"].astype(bf)
    zero_b = jnp.zeros((1, hid), f32)                                 # conv lin has no bias
    att_src = params["att_src"].astype(bf)                            # (1, hid)
    att_dst = params["att_dst"].astype(bf)                            # (hid, 1)
    w_out = jnp.pad(params["w_out"], ((0, 0), (0, o_pad - c_out))).astype(bf)
    b_out = jnp.pad(params["b_out"], ((0, 0), (0, o_pad - c_out)))
    b_g, gamma, beta = params["b_g"], params["gamma"], params["beta"]

    def full(shape):     # whole array resident across the grid
        return pl.BlockSpec(shape, lambda i: (0,) * len(shape))

    def row_tile(width):  # (tile_n, width) destination-node row tile
        return pl.BlockSpec((tile_n, width), lambda i: (i, 0))

    cp_par = pltpu.CompilerParams(dimension_semantics=("parallel",),
                                  vmem_limit_bytes=32 * 1024 * 1024)
    cp_seq = pltpu.CompilerParams(dimension_semantics=("arbitrary",))

    proj_out_shape = (jax.ShapeDtypeStruct((n, hid), bf),
                      jax.ShapeDtypeStruct((1, n), f32),
                      jax.ShapeDtypeStruct((n, 1), f32))
    proj_out_specs = (full((n, hid)), full((1, n)), full((n, 1)))

    # ---- stage 1 projection: h1 = x @ (w_ne @ w_g) + b_ne @ w_g -------------
    h1, a_src1, a_dst1 = pl.pallas_call(
        functools.partial(_project_kernel, ln_relu=False),
        grid=(1,),
        out_shape=proj_out_shape,
        in_specs=[full((n, c_pad)), full((c_pad, hid)), full((1, hid)),
                  full((1, hid)), full((hid, 1)), full((1, hid)), full((1, hid))],
        out_specs=proj_out_specs,
        compiler_params=cp_seq,
    )(x_pad, w_fused, b_fused, att_src, att_dst, gamma, beta)

    # ---- stage 1 attention + aggregation (tiled over destination nodes) -----
    x2 = pl.pallas_call(
        _attn_mid_kernel,
        grid=grid,
        out_shape=jax.ShapeDtypeStruct((n, hid), f32),
        in_specs=[full((n, hid)), full((1, n)), row_tile(1), row_tile(n),
                  full((1, hid))],
        out_specs=row_tile(hid),
        compiler_params=cp_par,
    )(h1, a_src1, a_dst1, adj_i8, b_g)

    # ---- stage 2 projection: h2 = relu(LN(x2)) @ w_g -------------------------
    h2, a_src2, a_dst2 = pl.pallas_call(
        functools.partial(_project_kernel, ln_relu=True),
        grid=(1,),
        out_shape=proj_out_shape,
        in_specs=[full((n, hid)), full((hid, hid)), full((1, hid)),
                  full((1, hid)), full((hid, 1)), full((1, hid)), full((1, hid))],
        out_specs=proj_out_specs,
        compiler_params=cp_seq,
    )(x2, w_g, zero_b, att_src, att_dst, gamma, beta)

    # ---- stage 2 attention + residual + LN/ReLU + output head ---------------
    out_pad = pl.pallas_call(
        _attn_final_kernel,
        grid=grid,
        out_shape=jax.ShapeDtypeStruct((n, o_pad), f32),
        in_specs=[full((n, hid)), full((1, n)), row_tile(1), row_tile(n),
                  full((1, hid)), row_tile(hid), full((1, hid)), full((1, hid)),
                  full((hid, o_pad)), full((1, o_pad))],
        out_specs=row_tile(o_pad),
        compiler_params=cp_par,
    )(h2, a_src2, a_dst2, adj_i8, b_g, x2, gamma, beta, w_out, b_out)

    return out_pad[:, :c_out]


def _reference_forward(x, adj, p):
    # Pure-JAX f32 reference (standard XLA path) for correctness checking.
    def conv(v):
        h = v @ p["w_g"]
        a_dst = h @ p["att_dst"]                        # (N, 1)
        a_src = (h * p["att_src"]).sum(-1)[None, :]     # (1, N)
        e = a_dst + a_src
        e = jnp.where(e > 0, e, NEG_SLOPE * e)
        e = jnp.where(adj > 0, e, MASK_VAL)
        e = e - e.max(-1, keepdims=True)
        pe = jnp.exp(e)
        alpha = pe / pe.sum(-1, keepdims=True)
        return alpha @ h + p["b_g"]

    x1 = x @ p["w_ne"] + p["b_ne"]
    x2 = conv(x1)
    h = jnp.maximum(_layernorm(x2, p["gamma"], p["beta"]), 0.0)
    x3 = conv(h) + x2
    x4 = jnp.maximum(_layernorm(x3, p["gamma"], p["beta"]), 0.0)
    return x4 @ p["w_out"] + p["b_out"]


if __name__ == "__main__":
    N, C_IN, HID, C_OUT, N_EDGES = 32, 16, 128, 8, 96
    # num_layers > 1 in the PyTorch module only adds fixed (identity) AdaGNNLayers,
    # so only layers[0]'s parameters affect the eval-mode forward pass.

    key = jax.random.PRNGKey(0)
    keys = jax.random.split(key, 12)
    params = {
        "w_ne":    jax.random.normal(keys[0], (C_IN, HID), jnp.float32) * 0.1,
        "b_ne":    jax.random.normal(keys[1], (1, HID), jnp.float32) * 0.1,
        "w_g":     jax.random.normal(keys[2], (HID, HID), jnp.float32) * 0.1,
        "att_src": jax.random.normal(keys[3], (1, HID), jnp.float32) * 0.1,
        "att_dst": jax.random.normal(keys[4], (HID, 1), jnp.float32) * 0.1,
        "b_g":     jax.random.normal(keys[5], (1, HID), jnp.float32) * 0.1,
        "gamma":   1.0 + jax.random.normal(keys[6], (1, HID), jnp.float32) * 0.01,
        "beta":    jax.random.normal(keys[7], (1, HID), jnp.float32) * 0.01,
        "w_out":   jax.random.normal(keys[8], (HID, C_OUT), jnp.float32) * 0.1,
        "b_out":   jax.random.normal(keys[9], (1, C_OUT), jnp.float32) * 0.1,
    }

    x = jax.random.normal(keys[10], (N, C_IN), jnp.float32)

    # Random edge_index (PyG convention: edge_index[0]=src, edge_index[1]=dst).
    src = jax.random.randint(keys[11], (N_EDGES,), 0, N)
    dst = jax.random.randint(jax.random.fold_in(keys[11], 1), (N_EDGES,), 0, N)
    edge_index = jnp.stack([src, dst])

    # Dense adjacency mask adj[dst, src] = 1, plus self loops (GATConv add_self_loops).
    adj = jnp.zeros((N, N), jnp.float32).at[edge_index[1], edge_index[0]].set(1.0)
    adj = jnp.maximum(adj, jnp.eye(N, dtype=jnp.float32))

    out = jax.block_until_ready(gat_forward(x, adj, params))
    ref = jax.block_until_ready(_reference_forward(x, adj, params))

    assert out.shape == (N, C_OUT)
    np.testing.assert_allclose(np.asarray(out), np.asarray(ref), rtol=4e-2, atol=4e-2)
    print("KERNEL_OK")
</pallas_src>

<mosaic_0001>
module attributes {stable_mosaic.version = 11 : i64} {
  func.func @_project_kernel(%arg0: i32, %arg1: memref<32x128xf32, #tpu.memory_space<vmem>>, %arg2: memref<128x128xbf16, #tpu.memory_space<vmem>>, %arg3: memref<1x128xf32, #tpu.memory_space<vmem>>, %arg4: memref<1x128xbf16, #tpu.memory_space<vmem>>, %arg5: memref<128x1xbf16, #tpu.memory_space<vmem>>, %arg6: memref<1x128xf32, #tpu.memory_space<vmem>>, %arg7: memref<1x128xf32, #tpu.memory_space<vmem>>, %arg8: memref<32x128xbf16, #tpu.memory_space<vmem>>, %arg9: memref<1x32xf32, #tpu.memory_space<vmem>>, %arg10: memref<32x1xf32, #tpu.memory_space<vmem>>) attributes {dimension_semantics = [#tpu.dimension_semantics<arbitrary>], iteration_bounds = array<i64: 1>, scalar_prefetch = 0 : i64, scratch_operands = 0 : i64, tpu.core_type = #tpu.core_type<tc>, window_params = [{pipeline_mode = #tpu.pipeline_mode<synchronous>, transform_indices = @transform_0, window_bounds = array<i64: 32, 128>}, {pipeline_mode = #tpu.pipeline_mode<synchronous>, transform_indices = @transform_1, window_bounds = array<i64: 128, 128>}, {pipeline_mode = #tpu.pipeline_mode<synchronous>, transform_indices = @transform_2, window_bounds = array<i64: 1, 128>}, {pipeline_mode = #tpu.pipeline_mode<synchronous>, transform_indices = @transform_3, window_bounds = array<i64: 1, 128>}, {pipeline_mode = #tpu.pipeline_mode<synchronous>, transform_indices = @transform_4, window_bounds = array<i64: 128, 1>}, {pipeline_mode = #tpu.pipeline_mode<synchronous>, transform_indices = @transform_5, window_bounds = array<i64: 1, 128>}, {pipeline_mode = #tpu.pipeline_mode<synchronous>, transform_indices = @transform_6, window_bounds = array<i64: 1, 128>}, {pipeline_mode = #tpu.pipeline_mode<synchronous>, transform_indices = @transform_7, window_bounds = array<i64: 32, 128>}, {pipeline_mode = #tpu.pipeline_mode<synchronous>, transform_indices = @transform_8, window_bounds = array<i64: 1, 32>}, {pipeline_mode = #tpu.pipeline_mode<synchronous>, transform_indices = @transform_9, window_bounds = array<i64: 32, 1>}]} {
    %c0 = arith.constant 0 : index
    %c0_0 = arith.constant 0 : index
    %0 = vector.load %arg1[%c0, %c0_0] : memref<32x128xf32, #tpu.memory_space<vmem>>, vector<32x128xf32>
    %c0_1 = arith.constant 0 : index
    %c0_2 = arith.constant 0 : index
    %1 = vector.load %arg6[%c0_1, %c0_2] : memref<1x128xf32, #tpu.memory_space<vmem>>, vector<1x128xf32>
    %c0_3 = arith.constant 0 : index
    %c0_4 = arith.constant 0 : index
    %2 = vector.load %arg7[%c0_3, %c0_4] : memref<1x128xf32, #tpu.memory_space<vmem>>, vector<1x128xf32>
    %cst = arith.constant dense<0.000000e+00> : vector<32xf32>
    %3 = vector.multi_reduction <add>, %0, %cst [1] : vector<32x128xf32> to vector<32xf32>
    %4 = vector.shape_cast %3 : vector<32xf32> to vector<32x1xf32>
    %cst_5 = arith.constant 1.280000e+02 : f32
    %5 = vector.broadcast %cst_5 : f32 to vector<32x1xf32>
    %6 = arith.divf %4, %5 : vector<32x1xf32>
    %7 = vector.broadcast %6 : vector<32x1xf32> to vector<32x128xf32>
    %8 = arith.subf %0, %7 : vector<32x128xf32>
    %9 = arith.mulf %8, %8 : vector<32x128xf32>
    %cst_6 = arith.constant dense<0.000000e+00> : vector<32xf32>
    %10 = vector.multi_reduction <add>, %9, %cst_6 [1] : vector<32x128xf32> to vector<32xf32>
    %11 = vector.shape_cast %10 : vector<32xf32> to vector<32x1xf32>
    %cst_7 = arith.constant 1.280000e+02 : f32
    %12 = vector.broadcast %cst_7 : f32 to vector<32x1xf32>
    %13 = arith.divf %11, %12 : vector<32x1xf32>
    %cst_8 = arith.constant 9.99999974E-6 : f32
    %14 = vector.broadcast %cst_8 : f32 to vector<32x1xf32>
    %15 = arith.addf %13, %14 : vector<32x1xf32>
    %16 = math.rsqrt %15 : vector<32x1xf32>
    %17 = vector.broadcast %16 : vector<32x1xf32> to vector<32x128xf32>
    %18 = arith.mulf %8, %17 : vector<32x128xf32>
    %19 = vector.broadcast %1 : vector<1x128xf32> to vector<32x128xf32>
    %20 = arith.mulf %18, %19 : vector<32x128xf32>
    %21 = vector.broadcast %2 : vector<1x128xf32> to vector<32x128xf32>
    %22 = arith.addf %20, %21 : vector<32x128xf32>
    %cst_9 = arith.constant 0.000000e+00 : f32
    %23 = vector.broadcast %cst_9 : f32 to vector<32x128xf32>
    %24 = arith.maximumf %22, %23 : vector<32x128xf32>
    %c0_10 = arith.constant 0 : index
    %c0_11 = arith.constant 0 : index
    %25 = vector.load %arg2[%c0_10, %c0_11] : memref<128x128xbf16, #tpu.memory_space<vmem>>, vector<128x128xbf16>
    %26 = arith.truncf %24 : vector<32x128xf32> to vector<32x128xbf16>
    %cst_12 = arith.constant dense<0.000000e+00> : vector<32x128xf32>
    %27 = tpu.matmul %26, %25, %cst_12 {dimension_numbers = #tpu.dot_dimension_numbers<[1], [0], [0], [1], [0, 0, 1, 1], [], []>} : vector<32x128xbf16>, vector<128x128xbf16>, vector<32x128xf32> -> vector<32x128xf32>
    %c0_13 = arith.constant 0 : index
    %c0_14 = arith.constant 0 : index
    %28 = vector.load %arg3[%c0_13, %c0_14] : memref<1x128xf32, #tpu.memory_space<vmem>>, vector<1x128xf32>
    %29 = vector.broadcast %28 : vector<1x128xf32> to vector<32x128xf32>
    %30 = arith.addf %27, %29 : vector<32x128xf32>
    %31 = arith.truncf %30 : vector<32x128xf32> to vector<32x128xbf16>
    %c0_15 = arith.constant 0 : index
    %c0_16 = arith.constant 0 : index
    %32 = vector.load %arg8[%c0_15, %c0_16] : memref<32x128xbf16, #tpu.memory_space<vmem>>, vector<32x128xbf16>
    tpu.vector_store %arg8[%c0_15, %c0_16], %31 {strides = array<i32>} : memref<32x128xbf16, #tpu.memory_space<vmem>>, vector<32x128xbf16>,
    %c0_17 = arith.constant 0 : index
    %c0_18 = arith.constant 0 : index
    %33 = vector.load %arg5[%c0_17, %c0_18] : memref<128x1xbf16, #tpu.memory_space<vmem>>, vector<128x1xbf16>
    %cst_19 = arith.constant dense<0.000000e+00> : vector<32x1xf32>
    %34 = tpu.matmul %31, %33, %cst_19 {dimension_numbers = #tpu.dot_dimension_numbers<[1], [0], [0], [1], [0, 0, 1, 1], [], []>} : vector<32x128xbf16>, vector<128x1xbf16>, vector<32x1xf32> -> vector<32x1xf32>
    %c0_20 = arith.constant 0 : index
    %c0_21 = arith.constant 0 : index
    %35 = vector.load %arg10[%c0_20, %c0_21] : memref<32x1xf32, #tpu.memory_space<vmem>>, vector<32x1xf32>
    tpu.vector_store %arg10[%c0_20, %c0_21], %34 {strides = array<i32>} : memref<32x1xf32, #tpu.memory_space<vmem>>, vector<32x1xf32>,
    %c0_22 = arith.constant 0 : index
    %c0_23 = arith.constant 0 : index
    %36 = vector.load %arg4[%c0_22, %c0_23] : memref<1x128xbf16, #tpu.memory_space<vmem>>, vector<1x128xbf16>
    %cst_24 = arith.constant dense<0.000000e+00> : vector<1x32xf32>
    %37 = tpu.matmul %36, %31, %cst_24 {dimension_numbers = #tpu.dot_dimension_numbers<[1], [1], [0], [0], [0, 0, 1, 0], [], []>} : vector<1x128xbf16>, vector<32x128xbf16>, vector<1x32xf32> -> vector<1x32xf32>
    %c0_25 = arith.constant 0 : index
    %c0_26 = arith.constant 0 : index
    %38 = vector.load %arg9[%c0_25, %c0_26] : memref<1x32xf32, #tpu.memory_space<vmem>>, vector<1x32xf32>
    tpu.vector_store %arg9[%c0_25, %c0_26], %37 {strides = array<i32>} : memref<1x32xf32, #tpu.memory_space<vmem>>, vector<1x32xf32>,
    return
  }
  func.func @transform_0(%arg0: i32) -> (i32, i32) {
    %c0_i32 = arith.constant 0 : i32
    %c0_i32_0 = arith.constant 0 : i32
    %c0_i32_1 = arith.constant 0 : i32
    return %c0_i32, %c0_i32_0 : i32, i32
  }
  func.func @transform_1(%arg0: i32) -> (i32, i32) {
    %c0_i32 = arith.constant 0 : i32
    %c0_i32_0 = arith.constant 0 : i32
    %c0_i32_1 = arith.constant 0 : i32
    return %c0_i32, %c0_i32_0 : i32, i32
  }
  func.func @transform_2(%arg0: i32) -> (i32, i32) {
    %c0_i32 = arith.constant 0 : i32
    %c0_i32_0 = arith.constant 0 : i32
    %c0_i32_1 = arith.constant 0 : i32
    return %c0_i32, %c0_i32_0 : i32, i32
  }
  func.func @transform_3(%arg0: i32) -> (i32, i32) {
    %c0_i32 = arith.constant 0 : i32
    %c0_i32_0 = arith.constant 0 : i32
    %c0_i32_1 = arith.constant 0 : i32
    return %c0_i32, %c0_i32_0 : i32, i32
  }
  func.func @transform_4(%arg0: i32) -> (i32, i32) {
    %c0_i32 = arith.constant 0 : i32
    %c0_i32_0 = arith.constant 0 : i32
    %c0_i32_1 = arith.constant 0 : i32
    return %c0_i32, %c0_i32_0 : i32, i32
  }
  func.func @transform_5(%arg0: i32) -> (i32, i32) {
    %c0_i32 = arith.constant 0 : i32
    %c0_i32_0 = arith.constant 0 : i32
    %c0_i32_1 = arith.constant 0 : i32
    return %c0_i32, %c0_i32_0 : i32, i32
  }
  func.func @transform_6(%arg0: i32) -> (i32, i32) {
    %c0_i32 = arith.constant 0 : i32
    %c0_i32_0 = arith.constant 0 : i32
    %c0_i32_1 = arith.constant 0 : i32
    return %c0_i32, %c0_i32_0 : i32, i32
  }
  func.func @transform_7(%arg0: i32) -> (i32, i32) {
    %c0_i32 = arith.constant 0 : i32
    %c0_i32_0 = arith.constant 0 : i32
    %c0_i32_1 = arith.constant 0 : i32
    return %c0_i32, %c0_i32_0 : i32, i32
  }
  func.func @transform_8(%arg0: i32) -> (i32, i32) {
    %c0_i32 = arith.constant 0 : i32
    %c0_i32_0 = arith.constant 0 : i32
    %c0_i32_1 = arith.constant 0 : i32
    return %c0_i32, %c0_i32_0 : i32, i32
  }
  func.func @transform_9(%arg0: i32) -> (i32, i32) {
    %c0_i32 = arith.constant 0 : i32
    %c0_i32_0 = arith.constant 0 : i32
    %c0_i32_1 = arith.constant 0 : i32
    return %c0_i32, %c0_i32_0 : i32, i32
  }
}

module attributes {stable_mosaic.version = 11 : i64} {
  func.func @_project_kernel(%arg0: i32, %arg1: memref<32x128xf32, #tpu.memory_space<vmem>>, %arg2: memref<128x128xbf16, #tpu.memory_space<vmem>>, %arg3: memref<1x128xf32, #tpu.memory_space<vmem>>, %arg4: memref<1x128xbf16, #tpu.memory_space<vmem>>, %arg5: memref<128x1xbf16, #tpu.memory_space<vmem>>, %arg6: memref<1x128xf32, #tpu.memory_space<vmem>>, %arg7: memref<1x128xf32, #tpu.memory_space<vmem>>, %arg8: memref<32x128xbf16, #tpu.memory_space<vmem>>, %arg9: memref<1x32xf32, #tpu.memory_space<vmem>>, %arg10: memref<32x1xf32, #tpu.memory_space<vmem>>) attributes {dimension_semantics = [#tpu.dimension_semantics<arbitrary>], iteration_bounds = array<i64: 1>, scalar_prefetch = 0 : i64, scratch_operands = 0 : i64, tpu.core_type = #tpu.core_type<tc>, window_params = [{pipeline_mode = #tpu.pipeline_mode<synchronous>, transform_indices = @transform_0, window_bounds = array<i64: 32, 128>}, {pipeline_mode = #tpu.pipeline_mode<synchronous>, transform_indices = @transform_1, window_bounds = array<i64: 128, 128>}, {pipeline_mode = #tpu.pipeline_mode<synchronous>, transform_indices = @transform_2, window_bounds = array<i64: 1, 128>}, {pipeline_mode = #tpu.pipeline_mode<synchronous>, transform_indices = @transform_3, window_bounds = array<i64: 1, 128>}, {pipeline_mode = #tpu.pipeline_mode<synchronous>, transform_indices = @transform_4, window_bounds = array<i64: 128, 1>}, {pipeline_mode = #tpu.pipeline_mode<synchronous>, transform_indices = @transform_5, window_bounds = array<i64: 1, 128>}, {pipeline_mode = #tpu.pipeline_mode<synchronous>, transform_indices = @transform_6, window_bounds = array<i64: 1, 128>}, {pipeline_mode = #tpu.pipeline_mode<synchronous>, transform_indices = @transform_7, window_bounds = array<i64: 32, 128>}, {pipeline_mode = #tpu.pipeline_mode<synchronous>, transform_indices = @transform_8, window_bounds = array<i64: 1, 32>}, {pipeline_mode = #tpu.pipeline_mode<synchronous>, transform_indices = @transform_9, window_bounds = array<i64: 32, 1>}]} {
    %c0 = arith.constant 0 : index
    %c0_0 = arith.constant 0 : index
    %0 = vector.load %arg1[%c0, %c0_0] : memref<32x128xf32, #tpu.memory_space<vmem>>, vector<32x128xf32>
    %c0_1 = arith.constant 0 : index
    %c0_2 = arith.constant 0 : index
    %1 = vector.load %arg2[%c0_1, %c0_2] : memref<128x128xbf16, #tpu.memory_space<vmem>>, vector<128x128xbf16>
    %2 = arith.truncf %0 : vector<32x128xf32> to vector<32x128xbf16>
    %cst = arith.constant dense<0.000000e+00> : vector<32x128xf32>
    %3 = tpu.matmul %2, %1, %cst {dimension_numbers = #tpu.dot_dimension_numbers<[1], [0], [0], [1], [0, 0, 1, 1], [], []>} : vector<32x128xbf16>, vector<128x128xbf16>, vector<32x128xf32> -> vector<32x128xf32>
    %c0_3 = arith.constant 0 : index
    %c0_4 = arith.constant 0 : index
    %4 = vector.load %arg3[%c0_3, %c0_4] : memref<1x128xf32, #tpu.memory_space<vmem>>, vector<1x128xf32>
    %5 = vector.broadcast %4 : vector<1x128xf32> to vector<32x128xf32>
    %6 = arith.addf %3, %5 : vector<32x128xf32>
    %7 = arith.truncf %6 : vector<32x128xf32> to vector<32x128xbf16>
    %c0_5 = arith.constant 0 : index
    %c0_6 = arith.constant 0 : index
    %8 = vector.load %arg8[%c0_5, %c0_6] : memref<32x128xbf16, #tpu.memory_space<vmem>>, vector<32x128xbf16>
    tpu.vector_store %arg8[%c0_5, %c0_6], %7 {strides = array<i32>} : memref<32x128xbf16, #tpu.memory_space<vmem>>, vector<32x128xbf16>,
    %c0_7 = arith.constant 0 : index
    %c0_8 = arith.constant 0 : index
    %9 = vector.load %arg5[%c0_7, %c0_8] : memref<128x1xbf16, #tpu.memory_space<vmem>>, vector<128x1xbf16>
    %cst_9 = arith.constant dense<0.000000e+00> : vector<32x1xf32>
    %10 = tpu.matmul %7, %9, %cst_9 {dimension_numbers = #tpu.dot_dimension_numbers<[1], [0], [0], [1], [0, 0, 1, 1], [], []>} : vector<32x128xbf16>, vector<128x1xbf16>, vector<32x1xf32> -> vector<32x1xf32>
    %c0_10 = arith.constant 0 : index
    %c0_11 = arith.constant 0 : index
    %11 = vector.load %arg10[%c0_10, %c0_11] : memref<32x1xf32, #tpu.memory_space<vmem>>, vector<32x1xf32>
    tpu.vector_store %arg10[%c0_10, %c0_11], %10 {strides = array<i32>} : memref<32x1xf32, #tpu.memory_space<vmem>>, vector<32x1xf32>,
    %c0_12 = arith.constant 0 : index
    %c0_13 = arith.constant 0 : index
    %12 = vector.load %arg4[%c0_12, %c0_13] : memref<1x128xbf16, #tpu.memory_space<vmem>>, vector<1x128xbf16>
    %cst_14 = arith.constant dense<0.000000e+00> : vector<1x32xf32>
    %13 = tpu.matmul %12, %7, %cst_14 {dimension_numbers = #tpu.dot_dimension_numbers<[1], [1], [0], [0], [0, 0, 1, 0], [], []>} : vector<1x128xbf16>, vector<32x128xbf16>, vector<1x32xf32> -> vector<1x32xf32>
    %c0_15 = arith.constant 0 : index
    %c0_16 = arith.constant 0 : index
    %14 = vector.load %arg9[%c0_15, %c0_16] : memref<1x32xf32, #tpu.memory_space<vmem>>, vector<1x32xf32>
    tpu.vector_store %arg9[%c0_15, %c0_16], %13 {strides = array<i32>} : memref<1x32xf32, #tpu.memory_space<vmem>>, vector<1x32xf32>,
    return
  }
  func.func @transform_0(%arg0: i32) -> (i32, i32) {
    %c0_i32 = arith.constant 0 : i32
    %c0_i32_0 = arith.constant 0 : i32
    %c0_i32_1 = arith.constant 0 : i32
    return %c0_i32, %c0_i32_0 : i32, i32
  }
  func.func @transform_1(%arg0: i32) -> (i32, i32) {
    %c0_i32 = arith.constant 0 : i32
    %c0_i32_0 = arith.constant 0 : i32
    %c0_i32_1 = arith.constant 0 : i32
    return %c0_i32, %c0_i32_0 : i32, i32
  }
  func.func @transform_2(%arg0: i32) -> (i32, i32) {
    %c0_i32 = arith.constant 0 : i32
    %c0_i32_0 = arith.constant 0 : i32
    %c0_i32_1 = arith.constant 0 : i32
    return %c0_i32, %c0_i32_0 : i32, i32
  }
  func.func @transform_3(%arg0: i32) -> (i32, i32) {
    %c0_i32 = arith.constant 0 : i32
    %c0_i32_0 = arith.constant 0 : i32
    %c0_i32_1 = arith.constant 0 : i32
    return %c0_i32, %c0_i32_0 : i32, i32
  }
  func.func @transform_4(%arg0: i32) -> (i32, i32) {
    %c0_i32 = arith.constant 0 : i32
    %c0_i32_0 = arith.constant 0 : i32
    %c0_i32_1 = arith.constant 0 : i32
    return %c0_i32, %c0_i32_0 : i32, i32
  }
  func.func @transform_5(%arg0: i32) -> (i32, i32) {
    %c0_i32 = arith.constant 0 : i32
    %c0_i32_0 = arith.constant 0 : i32
    %c0_i32_1 = arith.constant 0 : i32
    return %c0_i32, %c0_i32_0 : i32, i32
  }
  func.func @transform_6(%arg0: i32) -> (i32, i32) {
    %c0_i32 = arith.constant 0 : i32
    %c0_i32_0 = arith.constant 0 : i32
    %c0_i32_1 = arith.constant 0 : i32
    return %c0_i32, %c0_i32_0 : i32, i32
  }
  func.func @transform_7(%arg0: i32) -> (i32, i32) {
    %c0_i32 = arith.constant 0 : i32
    %c0_i32_0 = arith.constant 0 : i32
    %c0_i32_1 = arith.constant 0 : i32
    return %c0_i32, %c0_i32_0 : i32, i32
  }
  func.func @transform_8(%arg0: i32) -> (i32, i32) {
    %c0_i32 = arith.constant 0 : i32
    %c0_i32_0 = arith.constant 0 : i32
    %c0_i32_1 = arith.constant 0 : i32
    return %c0_i32, %c0_i32_0 : i32, i32
  }
  func.func @transform_9(%arg0: i32) -> (i32, i32) {
    %c0_i32 = arith.constant 0 : i32
    %c0_i32_0 = arith.constant 0 : i32
    %c0_i32_1 = arith.constant 0 : i32
    return %c0_i32, %c0_i32_0 : i32, i32
  }
}

module attributes {stable_mosaic.version = 11 : i64} {
  func.func @_attn_mid_kernel(%arg0: i32, %arg1: memref<32x128xbf16, #tpu.memory_space<vmem>>, %arg2: memref<1x32xf32, #tpu.memory_space<vmem>>, %arg3: memref<32x1xf32, #tpu.memory_space<vmem>>, %arg4: memref<32x32xi8, #tpu.memory_space<vmem>>, %arg5: memref<1x128xf32, #tpu.memory_space<vmem>>, %arg6: memref<32x128xf32, #tpu.memory_space<vmem>>) attributes {dimension_semantics = [#tpu.dimension_semantics<parallel>], iteration_bounds = array<i64: 1>, scalar_prefetch = 0 : i64, scratch_operands = 0 : i64, tpu.core_type = #tpu.core_type<tc>, window_params = [{pipeline_mode = #tpu.pipeline_mode<synchronous>, transform_indices = @transform_0, window_bounds = array<i64: 32, 128>}, {pipeline_mode = #tpu.pipeline_mode<synchronous>, transform_indices = @transform_1, window_bounds = array<i64: 1, 32>}, {transform_indices = @transform_2, window_bounds = array<i64: 32, 1>}, {transform_indices = @transform_3, window_bounds = array<i64: 32, 32>}, {pipeline_mode = #tpu.pipeline_mode<synchronous>, transform_indices = @transform_4, window_bounds = array<i64: 1, 128>}, {transform_indices = @transform_5, window_bounds = array<i64: 32, 128>}]} {
    %c0 = arith.constant 0 : index
    %c0_0 = arith.constant 0 : index
    %0 = vector.load %arg3[%c0, %c0_0] : memref<32x1xf32, #tpu.memory_space<vmem>>, vector<32x1xf32>
    %c0_1 = arith.constant 0 : index
    %c0_2 = arith.constant 0 : index
    %1 = vector.load %arg2[%c0_1, %c0_2] : memref<1x32xf32, #tpu.memory_space<vmem>>, vector<1x32xf32>
    %2 = vector.broadcast %0 : vector<32x1xf32> to vector<32x32xf32>
    %3 = vector.broadcast %1 : vector<1x32xf32> to vector<32x32xf32>
    %4 = arith.addf %2, %3 : vector<32x32xf32>
    %cst = arith.constant 2.000000e-01 : f32
    %5 = vector.broadcast %cst : f32 to vector<32x32xf32>
    %6 = arith.mulf %5, %4 : vector<32x32xf32>
    %7 = arith.maximumf %4, %6 : vector<32x32xf32>
    %c0_3 = arith.constant 0 : index
    %c0_4 = arith.constant 0 : index
    %8 = vector.load %arg4[%c0_3, %c0_4] : memref<32x32xi8, #tpu.memory_space<vmem>>, vector<32x32xi8>
    %c0_i8 = arith.constant 0 : i8
    %9 = vector.broadcast %c0_i8 : i8 to vector<32x32xi8>
    %10 = arith.cmpi ne, %8, %9 : vector<32x32xi8>
    %cst_5 = arith.constant -1.000000e+30 : f32
    %11 = vector.broadcast %cst_5 : f32 to vector<32x32xf32>
    %12 = arith.select %10, %7, %11 : vector<32x32xi1>, vector<32x32xf32>
    %cst_6 = arith.constant dense<0xFF800000> : vector<32xf32>
    %13 = vector.multi_reduction <maximumf>, %12, %cst_6 [1] : vector<32x32xf32> to vector<32xf32>
    %14 = vector.shape_cast %13 : vector<32xf32> to vector<32x1xf32>
    %15 = vector.broadcast %14 : vector<32x1xf32> to vector<32x32xf32>
    %16 = arith.subf %12, %15 : vector<32x32xf32>
    %17 = math.exp %16 : vector<32x32xf32>
    %cst_7 = arith.constant dense<0.000000e+00> : vector<32xf32>
    %18 = vector.multi_reduction <add>, %17, %cst_7 [1] : vector<32x32xf32> to vector<32xf32>
    %19 = vector.shape_cast %18 : vector<32xf32> to vector<32x1xf32>
    %20 = arith.truncf %17 : vector<32x32xf32> to vector<32x32xbf16>
    %c0_8 = arith.constant 0 : index
    %c0_9 = arith.constant 0 : index
    %21 = vector.load %arg1[%c0_8, %c0_9] : memref<32x128xbf16, #tpu.memory_space<vmem>>, vector<32x128xbf16>
    %cst_10 = arith.constant dense<0.000000e+00> : vector<32x128xf32>
    %22 = tpu.matmul %20, %21, %cst_10 {dimension_numbers = #tpu.dot_dimension_numbers<[1], [0], [0], [1], [0, 0, 1, 1], [], []>} : vector<32x32xbf16>, vector<32x128xbf16>, vector<32x128xf32> -> vector<32x128xf32>
    %23 = tpu.reciprocal %19 {approx = true} : vector<32x1xf32> -> vector<32x1xf32>
    %24 = vector.broadcast %23 : vector<32x1xf32> to vector<32x128xf32>
    %25 = arith.mulf %22, %24 : vector<32x128xf32>
    %c0_11 = arith.constant 0 : index
    %c0_12 = arith.constant 0 : index
    %26 = vector.load %arg5[%c0_11, %c0_12] : memref<1x128xf32, #tpu.memory_space<vmem>>, vector<1x128xf32>
    %27 = vector.broadcast %26 : vector<1x128xf32> to vector<32x128xf32>
    %28 = arith.addf %25, %27 : vector<32x128xf32>
    %c0_13 = arith.constant 0 : index
    %c0_14 = arith.constant 0 : index
    %29 = vector.load %arg6[%c0_13, %c0_14] : memref<32x128xf32, #tpu.memory_space<vmem>>, vector<32x128xf32>
    tpu.vector_store %arg6[%c0_13, %c0_14], %28 {strides = array<i32>} : memref<32x128xf32, #tpu.memory_space<vmem>>, vector<32x128xf32>,
    return
  }
  func.func @transform_0(%arg0: i32) -> (i32, i32) {
    %c0_i32 = arith.constant 0 : i32
    %c0_i32_0 = arith.constant 0 : i32
    %c0_i32_1 = arith.constant 0 : i32
    return %c0_i32, %c0_i32_0 : i32, i32
  }
  func.func @transform_1(%arg0: i32) -> (i32, i32) {
    %c0_i32 = arith.constant 0 : i32
    %c0_i32_0 = arith.constant 0 : i32
    %c0_i32_1 = arith.constant 0 : i32
    return %c0_i32, %c0_i32_0 : i32, i32
  }
  func.func @transform_2(%arg0: i32) -> (i32, i32) {
    %c0_i32 = arith.constant 0 : i32
    %c0_i32_0 = arith.constant 0 : i32
    return %arg0, %c0_i32 : i32, i32
  }
  func.func @transform_3(%arg0: i32) -> (i32, i32) {
    %c0_i32 = arith.constant 0 : i32
    %c0_i32_0 = arith.constant 0 : i32
    return %arg0, %c0_i32 : i32, i32
  }
  func.func @transform_4(%arg0: i32) -> (i32, i32) {
    %c0_i32 = arith.constant 0 : i32
    %c0_i32_0 = arith.constant 0 : i32
    %c0_i32_1 = arith.constant 0 : i32
    return %c0_i32, %c0_i32_0 : i32, i32
  }
  func.func @transform_5(%arg0: i32) -> (i32, i32) {
    %c0_i32 = arith.constant 0 : i32
    %c0_i32_0 = arith.constant 0 : i32
    return %arg0, %c0_i32 : i32, i32
  }
}

module attributes {stable_mosaic.version = 11 : i64} {
  func.func @_attn_final_kernel(%arg0: i32, %arg1: memref<32x128xbf16, #tpu.memory_space<vmem>>, %arg2: memref<1x32xf32, #tpu.memory_space<vmem>>, %arg3: memref<32x1xf32, #tpu.memory_space<vmem>>, %arg4: memref<32x32xi8, #tpu.memory_space<vmem>>, %arg5: memref<1x128xf32, #tpu.memory_space<vmem>>, %arg6: memref<32x128xf32, #tpu.memory_space<vmem>>, %arg7: memref<1x128xf32, #tpu.memory_space<vmem>>, %arg8: memref<1x128xf32, #tpu.memory_space<vmem>>, %arg9: memref<128x128xbf16, #tpu.memory_space<vmem>>, %arg10: memref<1x128xf32, #tpu.memory_space<vmem>>, %arg11: memref<32x128xf32, #tpu.memory_space<vmem>>) attributes {dimension_semantics = [#tpu.dimension_semantics<parallel>], iteration_bounds = array<i64: 1>, scalar_prefetch = 0 : i64, scratch_operands = 0 : i64, tpu.core_type = #tpu.core_type<tc>, window_params = [{pipeline_mode = #tpu.pipeline_mode<synchronous>, transform_indices = @transform_0, window_bounds = array<i64: 32, 128>}, {pipeline_mode = #tpu.pipeline_mode<synchronous>, transform_indices = @transform_1, window_bounds = array<i64: 1, 32>}, {transform_indices = @transform_2, window_bounds = array<i64: 32, 1>}, {transform_indices = @transform_3, window_bounds = array<i64: 32, 32>}, {pipeline_mode = #tpu.pipeline_mode<synchronous>, transform_indices = @transform_4, window_bounds = array<i64: 1, 128>}, {transform_indices = @transform_5, window_bounds = array<i64: 32, 128>}, {pipeline_mode = #tpu.pipeline_mode<synchronous>, transform_indices = @transform_6, window_bounds = array<i64: 1, 128>}, {pipeline_mode = #tpu.pipeline_mode<synchronous>, transform_indices = @transform_7, window_bounds = array<i64: 1, 128>}, {pipeline_mode = #tpu.pipeline_mode<synchronous>, transform_indices = @transform_8, window_bounds = array<i64: 128, 128>}, {pipeline_mode = #tpu.pipeline_mode<synchronous>, transform_indices = @transform_9, window_bounds = array<i64: 1, 128>}, {transform_indices = @transform_10, window_bounds = array<i64: 32, 128>}]} {
    %c0 = arith.constant 0 : index
    %c0_0 = arith.constant 0 : index
    %0 = vector.load %arg3[%c0, %c0_0] : memref<32x1xf32, #tpu.memory_space<vmem>>, vector<32x1xf32>
    %c0_1 = arith.constant 0 : index
    %c0_2 = arith.constant 0 : index
    %1 = vector.load %arg2[%c0_1, %c0_2] : memref<1x32xf32, #tpu.memory_space<vmem>>, vector<1x32xf32>
    %2 = vector.broadcast %0 : vector<32x1xf32> to vector<32x32xf32>
    %3 = vector.broadcast %1 : vector<1x32xf32> to vector<32x32xf32>
    %4 = arith.addf %2, %3 : vector<32x32xf32>
    %cst = arith.constant 2.000000e-01 : f32
    %5 = vector.broadcast %cst : f32 to vector<32x32xf32>
    %6 = arith.mulf %5, %4 : vector<32x32xf32>
    %7 = arith.maximumf %4, %6 : vector<32x32xf32>
    %c0_3 = arith.constant 0 : index
    %c0_4 = arith.constant 0 : index
    %8 = vector.load %arg4[%c0_3, %c0_4] : memref<32x32xi8, #tpu.memory_space<vmem>>, vector<32x32xi8>
    %c0_i8 = arith.constant 0 : i8
    %9 = vector.broadcast %c0_i8 : i8 to vector<32x32xi8>
    %10 = arith.cmpi ne, %8, %9 : vector<32x32xi8>
    %cst_5 = arith.constant -1.000000e+30 : f32
    %11 = vector.broadcast %cst_5 : f32 to vector<32x32xf32>
    %12 = arith.select %10, %7, %11 : vector<32x32xi1>, vector<32x32xf32>
    %cst_6 = arith.constant dense<0xFF800000> : vector<32xf32>
    %13 = vector.multi_reduction <maximumf>, %12, %cst_6 [1] : vector<32x32xf32> to vector<32xf32>
    %14 = vector.shape_cast %13 : vector<32xf32> to vector<32x1xf32>
    %15 = vector.broadcast %14 : vector<32x1xf32> to vector<32x32xf32>
    %16 = arith.subf %12, %15 : vector<32x32xf32>
    %17 = math.exp %16 : vector<32x32xf32>
    %cst_7 = arith.constant dense<0.000000e+00> : vector<32xf32>
    %18 = vector.multi_reduction <add>, %17, %cst_7 [1] : vector<32x32xf32> to vector<32xf32>
    %19 = vector.shape_cast %18 : vector<32xf32> to vector<32x1xf32>
    %20 = arith.truncf %17 : vector<32x32xf32> to vector<32x32xbf16>
    %c0_8 = arith.constant 0 : index
    %c0_9 = arith.constant 0 : index
    %21 = vector.load %arg1[%c0_8, %c0_9] : memref<32x128xbf16, #tpu.memory_space<vmem>>, vector<32x128xbf16>
    %cst_10 = arith.constant dense<0.000000e+00> : vector<32x128xf32>
    %22 = tpu.matmul %20, %21, %cst_10 {dimension_numbers = #tpu.dot_dimension_numbers<[1], [0], [0], [1], [0, 0, 1, 1], [], []>} : vector<32x32xbf16>, vector<32x128xbf16>, vector<32x128xf32> -> vector<32x128xf32>
    %23 = tpu.reciprocal %19 {approx = true} : vector<32x1xf32> -> vector<32x1xf32>
    %24 = vector.broadcast %23 : vector<32x1xf32> to vector<32x128xf32>
    %25 = arith.mulf %22, %24 : vector<32x128xf32>
    %c0_11 = arith.constant 0 : index
    %c0_12 = arith.constant 0 : index
    %26 = vector.load %arg5[%c0_11, %c0_12] : memref<1x128xf32, #tpu.memory_space<vmem>>, vector<1x128xf32>
    %27 = vector.broadcast %26 : vector<1x128xf32> to vector<32x128xf32>
    %28 = arith.addf %25, %27 : vector<32x128xf32>
    %c0_13 = arith.constant 0 : index
    %c0_14 = arith.constant 0 : index
    %29 = vector.load %arg6[%c0_13, %c0_14] : memref<32x128xf32, #tpu.memory_space<vmem>>, vector<32x128xf32>
    %30 = arith.addf %28, %29 : vector<32x128xf32>
    %c0_15 = arith.constant 0 : index
    %c0_16 = arith.constant 0 : index
    %31 = vector.load %arg7[%c0_15, %c0_16] : memref<1x128xf32, #tpu.memory_space<vmem>>, vector<1x128xf32>
    %c0_17 = arith.constant 0 : index
    %c0_18 = arith.constant 0 : index
    %32 = vector.load %arg8[%c0_17, %c0_18] : memref<1x128xf32, #tpu.memory_space<vmem>>, vector<1x128xf32>
    %cst_19 = arith.constant dense<0.000000e+00> : vector<32xf32>
    %33 = vector.multi_reduction <add>, %30, %cst_19 [1] : vector<32x128xf32> to vector<32xf32>
    %34 = vector.shape_cast %33 : vector<32xf32> to vector<32x1xf32>
    %cst_20 = arith.constant 1.280000e+02 : f32
    %35 = vector.broadcast %cst_20 : f32 to vector<32x1xf32>
    %36 = arith.divf %34, %35 : vector<32x1xf32>
    %37 = vector.broadcast %36 : vector<32x1xf32> to vector<32x128xf32>
    %38 = arith.subf %30, %37 : vector<32x128xf32>
    %39 = arith.mulf %38, %38 : vector<32x128xf32>
    %cst_21 = arith.constant dense<0.000000e+00> : vector<32xf32>
    %40 = vector.multi_reduction <add>, %39, %cst_21 [1] : vector<32x128xf32> to vector<32xf32>
    %41 = vector.shape_cast %40 : vector<32xf32> to vector<32x1xf32>
    %cst_22 = arith.constant 1.280000e+02 : f32
    %42 = vector.broadcast %cst_22 : f32 to vector<32x1xf32>
    %43 = arith.divf %41, %42 : vector<32x1xf32>
    %cst_23 = arith.constant 9.99999974E-6 : f32
    %44 = vector.broadcast %cst_23 : f32 to vector<32x1xf32>
    %45 = arith.addf %43, %44 : vector<32x1xf32>
    %46 = math.rsqrt %45 : vector<32x1xf32>
    %47 = vector.broadcast %46 : vector<32x1xf32> to vector<32x128xf32>
    %48 = arith.mulf %38, %47 : vector<32x128xf32>
    %49 = vector.broadcast %31 : vector<1x128xf32> to vector<32x128xf32>
    %50 = arith.mulf %48, %49 : vector<32x128xf32>
    %51 = vector.broadcast %32 : vector<1x128xf32> to vector<32x128xf32>
    %52 = arith.addf %50, %51 : vector<32x128xf32>
    %cst_24 = arith.constant 0.000000e+00 : f32
    %53 = vector.broadcast %cst_24 : f32 to vector<32x128xf32>
    %54 = arith.maximumf %52, %53 : vector<32x128xf32>
    %c0_25 = arith.constant 0 : index
    %c0_26 = arith.constant 0 : index
    %55 = vector.load %arg9[%c0_25, %c0_26] : memref<128x128xbf16, #tpu.memory_space<vmem>>, vector<128x128xbf16>
    %56 = arith.truncf %54 : vector<32x128xf32> to vector<32x128xbf16>
    %cst_27 = arith.constant dense<0.000000e+00> : vector<32x128xf32>
    %57 = tpu.matmul %56, %55, %cst_27 {dimension_numbers = #tpu.dot_dimension_numbers<[1], [0], [0], [1], [0, 0, 1, 1], [], []>} : vector<32x128xbf16>, vector<128x128xbf16>, vector<32x128xf32> -> vector<32x128xf32>
    %c0_28 = arith.constant 0 : index
    %c0_29 = arith.constant 0 : index
    %58 = vector.load %arg10[%c0_28, %c0_29] : memref<1x128xf32, #tpu.memory_space<vmem>>, vector<1x128xf32>
    %59 = vector.broadcast %58 : vector<1x128xf32> to vector<32x128xf32>
    %60 = arith.addf %57, %59 : vector<32x128xf32>
    %c0_30 = arith.constant 0 : index
    %c0_31 = arith.constant 0 : index
    %61 = vector.load %arg11[%c0_30, %c0_31] : memref<32x128xf32, #tpu.memory_space<vmem>>, vector<32x128xf32>
    tpu.vector_store %arg11[%c0_30, %c0_31], %60 {strides = array<i32>} : memref<32x128xf32, #tpu.memory_space<vmem>>, vector<32x128xf32>,
    return
  }
  func.func @transform_0(%arg0: i32) -> (i32, i32) {
    %c0_i32 = arith.constant 0 : i32
    %c0_i32_0 = arith.constant 0 : i32
    %c0_i32_1 = arith.constant 0 : i32
    return %c0_i32, %c0_i32_0 : i32, i32
  }
  func.func @transform_1(%arg0: i32) -> (i32, i32) {
    %c0_i32 = arith.constant 0 : i32
    %c0_i32_0 = arith.constant 0 : i32
    %c0_i32_1 = arith.constant 0 : i32
    return %c0_i32, %c0_i32_0 : i32, i32
  }
  func.func @transform_2(%arg0: i32) -> (i32, i32) {
    %c0_i32 = arith.constant 0 : i32
    %c0_i32_0 = arith.constant 0 : i32
    return %arg0, %c0_i32 : i32, i32
  }
  func.func @transform_3(%arg0: i32) -> (i32, i32) {
    %c0_i32 = arith.constant 0 : i32
    %c0_i32_0 = arith.constant 0 : i32
    return %arg0, %c0_i32 : i32, i32
  }
  func.func @transform_4(%arg0: i32) -> (i32, i32) {
    %c0_i32 = arith.constant 0 : i32
    %c0_i32_0 = arith.constant 0 : i32
    %c0_i32_1 = arith.constant 0 : i32
    return %c0_i32, %c0_i32_0 : i32, i32
  }
  func.func @transform_5(%arg0: i32) -> (i32, i32) {
    %c0_i32 = arith.constant 0 : i32
    %c0_i32_0 = arith.constant 0 : i32
    return %arg0, %c0_i32 : i32, i32
  }
  func.func @transform_6(%arg0: i32) -> (i32, i32) {
    %c0_i32 = arith.constant 0 : i32
    %c0_i32_0 = arith.constant 0 : i32
    %c0_i32_1 = arith.constant 0 : i32
    return %c0_i32, %c0_i32_0 : i32, i32
  }
  func.func @transform_7(%arg0: i32) -> (i32, i32) {
    %c0_i32 = arith.constant 0 : i32
    %c0_i32_0 = arith.constant 0 : i32
    %c0_i32_1 = arith.constant 0 : i32
    return %c0_i32, %c0_i32_0 : i32, i32
  }
  func.func @transform_8(%arg0: i32) -> (i32, i32) {
    %c0_i32 = arith.constant 0 : i32
    %c0_i32_0 = arith.constant 0 : i32
    %c0_i32_1 = arith.constant 0 : i32
    return %c0_i32, %c0_i32_0 : i32, i32
  }
  func.func @transform_9(%arg0: i32) -> (i32, i32) {
    %c0_i32 = arith.constant 0 : i32
    %c0_i32_0 = arith.constant 0 : i32
    %c0_i32_1 = arith.constant 0 : i32
    return %c0_i32, %c0_i32_0 : i32, i32
  }
  func.func @transform_10(%arg0: i32) -> (i32, i32) {
    %c0_i32 = arith.constant 0 : i32
    %c0_i32_0 = arith.constant 0 : i32
    return %arg0, %c0_i32 : i32, i32
  }
}

</mosaic_0001>

<llo_original>
// kernel: gat_forward.4
$region0: #{gat_forward.4}
  #allocation0 [shape = 'u32[]', space=smem, size = 0x4, offset = 0x4, fixed_abs, tag = 'smem constant byte address 0x4 - core index']
  #allocation1 [shape = 'u32[72,128]{1,0:T(1,128)}', space=vmem, size = 0x9000, scoped, tag = 'internal scratch']
  %s0 = inlined_call_operand.vmem [shape: f32[32,128], index: 0, kind: input, shape index: {}]
  %s1 = inlined_call_operand.vmem [shape: bf16[128,128], index: 1, kind: input, shape index: {}]
  %s2 = inlined_call_operand.vmem [shape: f32[1,128], index: 2, kind: input, shape index: {}]
  %s3 = inlined_call_operand.vmem [shape: bf16[1,128], index: 3, kind: input, shape index: {}]
  %s4 = inlined_call_operand.vmem [shape: bf16[128,1], index: 4, kind: input, shape index: {}]
  %s5 = inlined_call_operand.vmem [shape: f32[1,128], index: 5, kind: input, shape index: {}]
  %s6 = inlined_call_operand.vmem [shape: f32[1,128], index: 6, kind: input, shape index: {}]
  %s7 = inlined_call_operand.vmem [shape: bf16[32,128], index: 7, kind: output, shape index: {0}]
  %s8 = inlined_call_operand.vmem [shape: f32[1,32], index: 8, kind: output, shape index: {1}]
  %s9 = inlined_call_operand.vmem [shape: f32[32,1], index: 9, kind: output, shape index: {2}]
  %10 = xla_tuple %s7, %s8, %s9
  %s11 = sld [smem:[#allocation0]]
  $region54: #{gat_forward.4} parent=0
    _
  %s13 = ssub.s32 1, %s11
  %s14 = scalar_select 0, %s13, %s11
  // Predicated region
  $region2: #{gat_forward.4} parent=0 // pred_check
    _
  $region3: #{gat_forward.4} parent=0 // pred_check_branch
    %16 = sbr.rel (0) target = $region5
  $region4: #{gat_forward.4} parent=0 // pred_region
    _
  $region5: #{gat_forward.4} parent=0 // pred_fallthru
    _
  // Predicated region
  $region6: #{gat_forward.4} parent=0 // pred_check
    _
  $region7: #{gat_forward.4} parent=0 // pred_check_branch
    %18 = sbr.rel (0) target = $region9
  $region8: #{gat_forward.4} parent=0 // pred_region
    _
  $region9: #{gat_forward.4} parent=0 // pred_fallthru
    _
  // Predicated region
  $region10: #{gat_forward.4} parent=0 // pred_check
    _
  $region11: #{gat_forward.4} parent=0 // pred_check_branch
    %20 = sbr.rel (0) target = $region13
  $region12: #{gat_forward.4} parent=0 // pred_region
    _
  $region13: #{gat_forward.4} parent=0 // pred_fallthru
    _
  // Predicated region
  $region14: #{gat_forward.4} parent=0 // pred_check
    _
  $region15: #{gat_forward.4} parent=0 // pred_check_branch
    %22 = sbr.rel (0) target = $region17
  $region16: #{gat_forward.4} parent=0 // pred_region
    _
  $region17: #{gat_forward.4} parent=0 // pred_fallthru
    _
  // Predicated region
  $region18: #{gat_forward.4} parent=0 // pred_check
    _
  $region19: #{gat_forward.4} parent=0 // pred_check_branch
    %24 = sbr.rel (0) target = $region21
  $region20: #{gat_forward.4} parent=0 // pred_region
    _
  $region21: #{gat_forward.4} parent=0 // pred_fallthru
    _
  // Predicated region
  $region22: #{gat_forward.4} parent=0 // pred_check
    _
  $region23: #{gat_forward.4} parent=0 // pred_check_branch
    %26 = sbr.rel (0) target = $region25
  $region24: #{gat_forward.4} parent=0 // pred_region
    _
  $region25: #{gat_forward.4} parent=0 // pred_fallthru
    _
  // Predicated region
  $region26: #{gat_forward.4} parent=0 // pred_check
    _
  $region27: #{gat_forward.4} parent=0 // pred_check_branch
    %28 = sbr.rel (0) target = $region29
  $region28: #{gat_forward.4} parent=0 // pred_region
    _
  $region29: #{gat_forward.4} parent=0 // pred_fallthru
    _
  %v30 = vld [vmem:[%s0] sm:$0xff]
  %v31 = vld [vmem:[%s0 + $0x8] sm:$0xff]
  %v32 = vld [vmem:[%s0 + $0x10] sm:$0xff]
  %v33 = vld [vmem:[%s0 + $0x18] sm:$0xff]
  %v34 = vld [vmem:[%s1] sm:$0xf]
  %v35 = vld [vmem:[%s1 + $0x4] sm:$0xf]
  %v36 = vld [vmem:[%s1 + $0x8] sm:$0xf]
  %v37 = vld [vmem:[%s1 + $0xc] sm:$0xf]
  %v38 = vld [vmem:[%s1 + $0x10] sm:$0xf]
  %v39 = vld [vmem:[%s1 + $0x14] sm:$0xf]
  %v40 = vld [vmem:[%s1 + $0x18] sm:$0xf]
  %v41 = vld [vmem:[%s1 + $0x1c] sm:$0xf]
  %v42 = vld [vmem:[%s1 + $0x20] sm:$0xf]
  %v43 = vld [vmem:[%s1 + $0x24] sm:$0xf]
  %v44 = vld [vmem:[%s1 + $0x28] sm:$0xf]
  %v45 = vld [vmem:[%s1 + $0x2c] sm:$0xf]
  %v46 = vld [vmem:[%s1 + $0x30] sm:$0xf]
  %v47 = vld [vmem:[%s1 + $0x34] sm:$0xf]
  %v48 = vld [vmem:[%s1 + $0x38] sm:$0xf]
  %v49 = vld [vmem:[%s1 + $0x3c] sm:$0xf]
  %v50 = vpack.c.bf16 %v31, %v30
  %v51 = vpack.c.bf16 %v33, %v32
  %v52 = vld [vmem:[%s2] sm:$0x1]
  %v54 = vperm.slane %v52, 0
  %v72 = vunpack.c.l.b16 %v34
  %v73 = vunpack.c.l.b16 %v35
  %v74 = vunpack.c.l.b16 %v36
  %v75 = vunpack.c.l.b16 %v37
  %v76 = vunpack.c.l.b16 %v38
  %v77 = vunpack.c.l.b16 %v39
  %v78 = vunpack.c.l.b16 %v40
  %v79 = vunpack.c.l.b16 %v41
  %v80 = vunpack.c.l.b16 %v42
  %v81 = vunpack.c.l.b16 %v43
  %v82 = vunpack.c.l.b16 %v44
  %v83 = vunpack.c.l.b16 %v45
  %v84 = vunpack.c.l.b16 %v46
  %v85 = vunpack.c.l.b16 %v47
  %v86 = vunpack.c.l.b16 %v48
  %v87 = vunpack.c.l.b16 %v49
  %v88 = vpack.c.b16 %v73, %v72
  %v89 = vpack.c.b16 %v75, %v74
  %v90 = vpack.c.b16 %v77, %v76
  %v91 = vpack.c.b16 %v79, %v78
  %v92 = vpack.c.b16 %v81, %v80
  %v93 = vpack.c.b16 %v83, %v82
  %v94 = vpack.c.b16 %v85, %v84
  %v95 = vpack.c.b16 %v87, %v86
  %104 = vmatpush.bf16.msra.mxu0 %v95
  %105 = vmatpush.bf16.msra.mxu0 %v94
  %106 = vmatpush.bf16.msra.mxu0 %v93
  %107 = vmatpush.bf16.msra.mxu0 %v92
  %108 = vmatpush.bf16.msra.mxu0 %v91
  %109 = vmatpush.bf16.msra.mxu0 %v90
  %110 = vmatpush.bf16.msra.mxu0 %v89
  %111 = vmatpush.bf16.msra.mxu0 %v88
  %112 = vmatmul.bf16.gmra.mxu0 %v50
  %v113 = vpop.f32.mrf.mxu0
  %v114 = vadd.f32 %v54, %v113
  %v115 = vpop.f32.mrf.mxu0
  %v116 = vadd.f32 %v54, %v115
  %117 = vmatmul.bf16.gmra.mxu0 %v51
  %v118 = vpop.f32.mrf.mxu0
  %v119 = vadd.f32 %v54, %v118
  %v120 = vpop.f32.mrf.mxu0
  %v121 = vadd.f32 %v54, %v120
  %122 = vdwg.mxu0
  %v123 = vpack.c.bf16 %v114, %v114
  %v124 = vpack.c.bf16 %v116, %v116
  %v125 = vpack.c.bf16 %v119, %v119
  %v126 = vpack.c.bf16 %v121, %v121
  %127 = vst [vmem:[%s7] sm:$0xf] %v123
  %128 = vst [vmem:[%s7 + $0x4] sm:$0xf] %v124
  %129 = vst [vmem:[%s7 + $0x8] sm:$0xf] %v125
  %130 = vst [vmem:[%s7 + $0xc] sm:$0xf] %v126
  %v131 = vld [vmem:[%s4] sm:$0xf]
  %v132 = vld [vmem:[%s4 + $0x4] sm:$0xf]
  %v133 = vld [vmem:[%s4 + $0x8] sm:$0xf]
  %v134 = vld [vmem:[%s4 + $0xc] sm:$0xf]
  %v135 = vld [vmem:[%s4 + $0x10] sm:$0xf]
  %v136 = vld [vmem:[%s4 + $0x14] sm:$0xf]
  %v137 = vld [vmem:[%s4 + $0x18] sm:$0xf]
  %v138 = vld [vmem:[%s4 + $0x1c] sm:$0xf]
  %v139 = vld [vmem:[%s4 + $0x20] sm:$0xf]
  %v140 = vld [vmem:[%s4 + $0x24] sm:$0xf]
  %v141 = vld [vmem:[%s4 + $0x28] sm:$0xf]
  %v142 = vld [vmem:[%s4 + $0x2c] sm:$0xf]
  %v143 = vld [vmem:[%s4 + $0x30] sm:$0xf]
  %v144 = vld [vmem:[%s4 + $0x34] sm:$0xf]
  %v145 = vld [vmem:[%s4 + $0x38] sm:$0xf]
  %v146 = vld [vmem:[%s4 + $0x3c] sm:$0xf]
  %v151 = vunpack.c.l.b16 %v123
  %v152 = vunpack.c.l.b16 %v124
  %v153 = vunpack.c.l.b16 %v125
  %v154 = vunpack.c.l.b16 %v126
  %v155 = vpack.c.b16 %v152, %v151
  %v156 = vpack.c.b16 %v154, %v153
  %v175 = vunpack.c.l.b16 %v131
  %v176 = vunpack.c.l.b16 %v132
  %v177 = vunpack.c.l.b16 %v133
  %v178 = vunpack.c.l.b16 %v134
  %v179 = vunpack.c.l.b16 %v135
  %v180 = vunpack.c.l.b16 %v136
  %v181 = vunpack.c.l.b16 %v137
  %v182 = vunpack.c.l.b16 %v138
  %v183 = vunpack.c.l.b16 %v139
  %v184 = vunpack.c.l.b16 %v140
  %v185 = vunpack.c.l.b16 %v141
  %v186 = vunpack.c.l.b16 %v142
  %v187 = vunpack.c.l.b16 %v143
  %v188 = vunpack.c.l.b16 %v144
  %v189 = vunpack.c.l.b16 %v145
  %v190 = vunpack.c.l.b16 %v146
  %v191 = vpack.c.b16 %v176, %v175
  %v192 = vpack.c.b16 %v178, %v177
  %v193 = vpack.c.b16 %v180, %v179
  %v194 = vpack.c.b16 %v182, %v181
  %v195 = vpack.c.b16 %v184, %v183
  %v196 = vpack.c.b16 %v186, %v185
  %v197 = vpack.c.b16 %v188, %v187
  %v198 = vpack.c.b16 %v190, %v189
  %207 = vmatpush.bf16.msra.mxu0 %v198
  %208 = vmatpush.bf16.msra.mxu0 %v197
  %209 = vmatpush.bf16.msra.mxu0 %v196
  %210 = vmatpush.bf16.msra.mxu0 %v195
  %211 = vmatpush.bf16.msra.mxu0 %v194
  %212 = vmatpush.bf16.msra.mxu0 %v193
  %213 = vmatpush.bf16.msra.mxu0 %v192
  %214 = vmatpush.bf16.msra.mxu0 %v191
  %215 = vmatmul.bf16.gmra.mxu0 %v155
  %v216 = vpop.f32.mrf.mxu0
  %v217 = vadd.f32 0.0, %v216
  %v218 = vpop.f32.mrf.mxu0
  %v219 = vadd.f32 0.0, %v218
  %220 = vmatmul.bf16.gmra.mxu0 %v156
  %v221 = vpop.f32.mrf.mxu0
  %v222 = vadd.f32 0.0, %v221
  %v223 = vpop.f32.mrf.mxu0
  %v224 = vadd.f32 0.0, %v223
  %225 = vdwg.mxu0
  %vm226 = vcmask 7168
  %227 = vst.msk [vmem:[%s9] sm:$0xff] %vm226, %v217
  %228 = vst.msk [vmem:[%s9 + $0x8] sm:$0xff] %vm226, %v219
  %229 = vst.msk [vmem:[%s9 + $0x10] sm:$0xff] %vm226, %v222
  %230 = vst.msk [vmem:[%s9 + $0x18] sm:$0xff] %vm226, %v224
  %v231 = vld [vmem:[%s3] sm:$0x1]
  %232 = vmatpush.bf16.xpose.msra.mxu0 0
  %233 = vmatpush.bf16.xpose.msra.mxu0 0
  %234 = vmatpush.bf16.xpose.msra.mxu0 0
  %235 = vmatpush.bf16.xpose.msra.mxu0 0
  %236 = vmatpush.bf16.xpose.msra.mxu0 0
  %237 = vmatpush.bf16.xpose.msra.mxu0 0
  %238 = vmatpush.bf16.xpose.msra.mxu0 %v156
  %239 = vmatpush.bf16.xpose.msra.mxu0 %v155
  %240 = vmatmul.bf16.gmra.mxu0 %v231
  %v241 = vpop.f32.mrf.mxu0
  %v242 = vadd.f32 0.0, %v241
  %v243 = vpop.f32.mrf.mxu0
  %244 = vdwg.mxu0
  %vm245 = vcmask 253952
  %246 = vst.msk [vmem:[%s8] sm:$0x1] %vm245, %v242
  // Predicated region
  $region30: #{gat_forward.4} parent=0 // pred_check
    _
  $region31: #{gat_forward.4} parent=0 // pred_check_branch
    %248 = sbr.rel (0) target = $region33
  $region32: #{gat_forward.4} parent=0 // pred_region
    _
  $region33: #{gat_forward.4} parent=0 // pred_fallthru
    _
  // Predicated region
  $region34: #{gat_forward.4} parent=0 // pred_check
    _
  $region35: #{gat_forward.4} parent=0 // pred_check_branch
    %250 = sbr.rel (0) target = $region37
  $region36: #{gat_forward.4} parent=0 // pred_region
    _
  $region37: #{gat_forward.4} parent=0 // pred_fallthru
    _
  // Predicated region
  $region38: #{gat_forward.4} parent=0 // pred_check
    _
  $region39: #{gat_forward.4} parent=0 // pred_check_branch
    %252 = sbr.rel (0) target = $region41
  $region40: #{gat_forward.4} parent=0 // pred_region
    _
  $region41: #{gat_forward.4} parent=0 // pred_fallthru
    _
  // Predicated region
  $region42: #{gat_forward.4} parent=0 // pred_check
    _
  $region43: #{gat_forward.4} parent=0 // pred_check_branch
    %254 = sbr.rel (0) target = $region45
  $region44: #{gat_forward.4} parent=0 // pred_region
    _
  $region45: #{gat_forward.4} parent=0 // pred_fallthru
    _
  // Predicated region
  $region46: #{gat_forward.4} parent=0 // pred_check
    _
  $region47: #{gat_forward.4} parent=0 // pred_check_branch
    %256 = sbr.rel (0) target = $region49
  $region48: #{gat_forward.4} parent=0 // pred_region
    _
  $region49: #{gat_forward.4} parent=0 // pred_fallthru
    _
  // Predicated region
  $region50: #{gat_forward.4} parent=0 // pred_check
    _
  $region51: #{gat_forward.4} parent=0 // pred_check_branch
    %258 = sbr.rel (0) target = $region53
  $region52: #{gat_forward.4} parent=0 // pred_region
    _
  $region53: #{gat_forward.4} parent=0 // pred_fallthru
    _

// kernel: gat_forward.6
$region0: #{gat_forward.6}
  #allocation0 [shape = 'u32[]', space=smem, size = 0x4, offset = 0x4, fixed_abs, tag = 'smem constant byte address 0x4 - core index']
  #allocation1 [shape = 'u32[72,128]{1,0:T(1,128)}', space=vmem, size = 0x9000, scoped, tag = 'internal scratch']
  %s0 = inlined_call_operand.vmem [shape: f32[32,128], index: 0, kind: input, shape index: {}]
  %s1 = inlined_call_operand.vmem [shape: bf16[128,128], index: 1, kind: input, shape index: {}]
  %s2 = inlined_call_operand.vmem [shape: f32[1,128], index: 2, kind: input, shape index: {}]
  %s3 = inlined_call_operand.vmem [shape: bf16[1,128], index: 3, kind: input, shape index: {}]
  %s4 = inlined_call_operand.vmem [shape: bf16[128,1], index: 4, kind: input, shape index: {}]
  %s5 = inlined_call_operand.vmem [shape: f32[1,128], index: 5, kind: input, shape index: {}]
  %s6 = inlined_call_operand.vmem [shape: f32[1,128], index: 6, kind: input, shape index: {}]
  %s7 = inlined_call_operand.vmem [shape: bf16[32,128], index: 7, kind: output, shape index: {0}]
  %s8 = inlined_call_operand.vmem [shape: f32[1,32], index: 8, kind: output, shape index: {1}]
  %s9 = inlined_call_operand.vmem [shape: f32[32,1], index: 9, kind: output, shape index: {2}]
  %10 = xla_tuple %s7, %s8, %s9
  %s11 = sld [smem:[#allocation0]]
  $region54: #{gat_forward.6} parent=0
    _
  %s13 = ssub.s32 1, %s11
  %s14 = scalar_select 0, %s13, %s11
  // Predicated region
  $region2: #{gat_forward.6} parent=0 // pred_check
    _
  $region3: #{gat_forward.6} parent=0 // pred_check_branch
    %16 = sbr.rel (0) target = $region5
  $region4: #{gat_forward.6} parent=0 // pred_region
    _
  $region5: #{gat_forward.6} parent=0 // pred_fallthru
    _
  // Predicated region
  $region6: #{gat_forward.6} parent=0 // pred_check
    _
  $region7: #{gat_forward.6} parent=0 // pred_check_branch
    %18 = sbr.rel (0) target = $region9
  $region8: #{gat_forward.6} parent=0 // pred_region
    _
  $region9: #{gat_forward.6} parent=0 // pred_fallthru
    _
  // Predicated region
  $region10: #{gat_forward.6} parent=0 // pred_check
    _
  $region11: #{gat_forward.6} parent=0 // pred_check_branch
    %20 = sbr.rel (0) target = $region13
  $region12: #{gat_forward.6} parent=0 // pred_region
    _
  $region13: #{gat_forward.6} parent=0 // pred_fallthru
    _
  // Predicated region
  $region14: #{gat_forward.6} parent=0 // pred_check
    _
  $region15: #{gat_forward.6} parent=0 // pred_check_branch
    %22 = sbr.rel (0) target = $region17
  $region16: #{gat_forward.6} parent=0 // pred_region
    _
  $region17: #{gat_forward.6} parent=0 // pred_fallthru
    _
  // Predicated region
  $region18: #{gat_forward.6} parent=0 // pred_check
    _
  $region19: #{gat_forward.6} parent=0 // pred_check_branch
    %24 = sbr.rel (0) target = $region21
  $region20: #{gat_forward.6} parent=0 // pred_region
    _
  $region21: #{gat_forward.6} parent=0 // pred_fallthru
    _
  // Predicated region
  $region22: #{gat_forward.6} parent=0 // pred_check
    _
  $region23: #{gat_forward.6} parent=0 // pred_check_branch
    %26 = sbr.rel (0) target = $region25
  $region24: #{gat_forward.6} parent=0 // pred_region
    _
  $region25: #{gat_forward.6} parent=0 // pred_fallthru
    _
  // Predicated region
  $region26: #{gat_forward.6} parent=0 // pred_check
    _
  $region27: #{gat_forward.6} parent=0 // pred_check_branch
    %28 = sbr.rel (0) target = $region29
  $region28: #{gat_forward.6} parent=0 // pred_region
    _
  $region29: #{gat_forward.6} parent=0 // pred_fallthru
    _
  %v30 = vld [vmem:[%s0] sm:$0xff]
  %v31 = vld [vmem:[%s0 + $0x8] sm:$0xff]
  %v32 = vld [vmem:[%s0 + $0x10] sm:$0xff]
  %v33 = vld [vmem:[%s0 + $0x18] sm:$0xff]
  %v34 = vld [vmem:[%s5] sm:$0x1]
  %v35 = vld [vmem:[%s6] sm:$0x1]
  %36 = vadd.xlane.f32.xlu0 %v30
  %v37 = vpop.xlane.xlu0 %36
  %38 = vadd.xlane.f32.xlu0 %v31
  %v39 = vpop.xlane.xlu0 %38
  %40 = vadd.xlane.f32.xlu0 %v32
  %v41 = vpop.xlane.xlu0 %40
  %42 = vadd.xlane.f32.xlu0 %v33
  %v43 = vpop.xlane.xlu0 %42
  %v44 = vrcp.pop 128.0
  %v45 = vmul.f32 128.0, %v44
  %v46 = vsub.f32 1.0, %v45
  %v47 = vmul.f32 %v44, %v46
  %v48 = vadd.f32 %v44, %v47
  %vm49 = vweird.f32 %v44
  %v50 = vsel %vm49, %v44, %v48
  %v51 = vmul.f32 %v37, %v50
  %v52 = vmul.f32 %v39, %v50
  %v53 = vmul.f32 %v41, %v50
  %v54 = vmul.f32 %v43, %v50
  %v55 = vsub.f32 %v30, %v51
  %v56 = vsub.f32 %v31, %v52
  %v57 = vsub.f32 %v32, %v53
  %v58 = vsub.f32 %v33, %v54
  %v59 = vmul.f32 %v55, %v55
  %v60 = vmul.f32 %v56, %v56
  %v61 = vmul.f32 %v57, %v57
  %v62 = vmul.f32 %v58, %v58
  %63 = vadd.xlane.f32.xlu0 %v59
  %v64 = vpop.xlane.xlu0 %63
  %65 = vadd.xlane.f32.xlu0 %v60
  %v66 = vpop.xlane.xlu0 %65
  %67 = vadd.xlane.f32.xlu0 %v61
  %v68 = vpop.xlane.xlu0 %67
  %69 = vadd.xlane.f32.xlu0 %v62
  %v70 = vpop.xlane.xlu0 %69
  %v71 = vmul.f32 %v64, %v50
  %v72 = vmul.f32 %v66, %v50
  %v73 = vmul.f32 %v68, %v50
  %v74 = vmul.f32 %v70, %v50
  %v75 = vadd.f32 %v71, 1e-05
  %v76 = vadd.f32 %v72, 1e-05
  %v77 = vadd.f32 %v73, 1e-05
  %v78 = vadd.f32 %v74, 1e-05
  %v79 = vrsqrt.pop %v75
  %v80 = vmul.f32 %v79, %v75
  %v81 = vmul.f32 %v80, %v79
  %v82 = vmul.f32 0.5, %v81
  %v83 = vsub.f32 1.5, %v82
  %v84 = vmul.f32 %v79, %v83
  %vm85 = vweird.f32 %v75
  %vm86 = vweird.f32 %v79
  %vm87 = vmor %vm85, %vm86
  %v88 = vsel %vm87, %v79, %v84
  %v89 = vrsqrt.pop %v76
  %v90 = vmul.f32 %v89, %v76
  %v91 = vmul.f32 %v90, %v89
  %v92 = vmul.f32 0.5, %v91
  %v93 = vsub.f32 1.5, %v92
  %v94 = vmul.f32 %v89, %v93
  %vm95 = vweird.f32 %v76
  %vm96 = vweird.f32 %v89
  %vm97 = vmor %vm95, %vm96
  %v98 = vsel %vm97, %v89, %v94
  %v99 = vrsqrt.pop %v77
  %v100 = vmul.f32 %v99, %v77
  %v101 = vmul.f32 %v100, %v99
  %v102 = vmul.f32 0.5, %v101
  %v103 = vsub.f32 1.5, %v102
  %v104 = vmul.f32 %v99, %v103
  %vm105 = vweird.f32 %v77
  %vm106 = vweird.f32 %v99
  %vm107 = vmor %vm105, %vm106
  %v108 = vsel %vm107, %v99, %v104
  %v109 = vrsqrt.pop %v78
  %v110 = vmul.f32 %v109, %v78
  %v111 = vmul.f32 %v110, %v109
  %v112 = vmul.f32 0.5, %v111
  %v113 = vsub.f32 1.5, %v112
  %v114 = vmul.f32 %v109, %v113
  %vm115 = vweird.f32 %v78
  %vm116 = vweird.f32 %v109
  %vm117 = vmor %vm115, %vm116
  %v118 = vsel %vm117, %v109, %v114
  %v119 = vmul.f32 %v55, %v88
  %v120 = vmul.f32 %v56, %v98
  %v121 = vmul.f32 %v57, %v108
  %v122 = vmul.f32 %v58, %v118
  %v124 = vperm.slane %v34, 0
  %v126 = vmul.f32 %v119, %v124
  %v127 = vmul.f32 %v120, %v124
  %v128 = vmul.f32 %v121, %v124
  %v129 = vmul.f32 %v122, %v124
  %v131 = vperm.slane %v35, 0
  %v133 = vadd.f32 %v126, %v131
  %v134 = vadd.f32 %v127, %v131
  %v135 = vadd.f32 %v128, %v131
  %v136 = vadd.f32 %v129, %v131
  %v137 = vmax.f32 %v133, 0.0
  %v138 = vmax.f32 %v134, 0.0
  %v139 = vmax.f32 %v135, 0.0
  %v140 = vmax.f32 %v136, 0.0
  %v141 = vld [vmem:[%s1] sm:$0xf]
  %v142 = vld [vmem:[%s1 + $0x4] sm:$0xf]
  %v143 = vld [vmem:[%s1 + $0x8] sm:$0xf]
  %v144 = vld [vmem:[%s1 + $0xc] sm:$0xf]
  %v145 = vld [vmem:[%s1 + $0x10] sm:$0xf]
  %v146 = vld [vmem:[%s1 + $0x14] sm:$0xf]
  %v147 = vld [vmem:[%s1 + $0x18] sm:$0xf]
  %v148 = vld [vmem:[%s1 + $0x1c] sm:$0xf]
  %v149 = vld [vmem:[%s1 + $0x20] sm:$0xf]
  %v150 = vld [vmem:[%s1 + $0x24] sm:$0xf]
  %v151 = vld [vmem:[%s1 + $0x28] sm:$0xf]
  %v152 = vld [vmem:[%s1 + $0x2c] sm:$0xf]
  %v153 = vld [vmem:[%s1 + $0x30] sm:$0xf]
  %v154 = vld [vmem:[%s1 + $0x34] sm:$0xf]
  %v155 = vld [vmem:[%s1 + $0x38] sm:$0xf]
  %v156 = vld [vmem:[%s1 + $0x3c] sm:$0xf]
  %v157 = vpack.c.bf16 %v138, %v137
  %v158 = vpack.c.bf16 %v140, %v139
  %v159 = vld [vmem:[%s2] sm:$0x1]
  %v161 = vperm.slane %v159, 0
  %v179 = vunpack.c.l.b16 %v141
  %v180 = vunpack.c.l.b16 %v142
  %v181 = vunpack.c.l.b16 %v143
  %v182 = vunpack.c.l.b16 %v144
  %v183 = vunpack.c.l.b16 %v145
  %v184 = vunpack.c.l.b16 %v146
  %v185 = vunpack.c.l.b16 %v147
  %v186 = vunpack.c.l.b16 %v148
  %v187 = vunpack.c.l.b16 %v149
  %v188 = vunpack.c.l.b16 %v150
  %v189 = vunpack.c.l.b16 %v151
  %v190 = vunpack.c.l.b16 %v152
  %v191 = vunpack.c.l.b16 %v153
  %v192 = vunpack.c.l.b16 %v154
  %v193 = vunpack.c.l.b16 %v155
  %v194 = vunpack.c.l.b16 %v156
  %v195 = vpack.c.b16 %v180, %v179
  %v196 = vpack.c.b16 %v182, %v181
  %v197 = vpack.c.b16 %v184, %v183
  %v198 = vpack.c.b16 %v186, %v185
  %v199 = vpack.c.b16 %v188, %v187
  %v200 = vpack.c.b16 %v190, %v189
  %v201 = vpack.c.b16 %v192, %v191
  %v202 = vpack.c.b16 %v194, %v193
  %211 = vmatpush.bf16.msra.mxu0 %v202
  %212 = vmatpush.bf16.msra.mxu0 %v201
  %213 = vmatpush.bf16.msra.mxu0 %v200
  %214 = vmatpush.bf16.msra.mxu0 %v199
  %215 = vmatpush.bf16.msra.mxu0 %v198
  %216 = vmatpush.bf16.msra.mxu0 %v197
  %217 = vmatpush.bf16.msra.mxu0 %v196
  %218 = vmatpush.bf16.msra.mxu0 %v195
  %219 = vmatmul.bf16.gmra.mxu0 %v157
  %v220 = vpop.f32.mrf.mxu0
  %v221 = vadd.f32 %v161, %v220
  %v222 = vpop.f32.mrf.mxu0
  %v223 = vadd.f32 %v161, %v222
  %224 = vmatmul.bf16.gmra.mxu0 %v158
  %v225 = vpop.f32.mrf.mxu0
  %v226 = vadd.f32 %v161, %v225
  %v227 = vpop.f32.mrf.mxu0
  %v228 = vadd.f32 %v161, %v227
  %229 = vdwg.mxu0
  %v230 = vpack.c.bf16 %v221, %v221
  %v231 = vpack.c.bf16 %v223, %v223
  %v232 = vpack.c.bf16 %v226, %v226
  %v233 = vpack.c.bf16 %v228, %v228
  %234 = vst [vmem:[%s7] sm:$0xf] %v230
  %235 = vst [vmem:[%s7 + $0x4] sm:$0xf] %v231
  %236 = vst [vmem:[%s7 + $0x8] sm:$0xf] %v232
  %237 = vst [vmem:[%s7 + $0xc] sm:$0xf] %v233
  %v238 = vld [vmem:[%s4] sm:$0xf]
  %v239 = vld [vmem:[%s4 + $0x4] sm:$0xf]
  %v240 = vld [vmem:[%s4 + $0x8] sm:$0xf]
  %v241 = vld [vmem:[%s4 + $0xc] sm:$0xf]
  %v242 = vld [vmem:[%s4 + $0x10] sm:$0xf]
  %v243 = vld [vmem:[%s4 + $0x14] sm:$0xf]
  %v244 = vld [vmem:[%s4 + $0x18] sm:$0xf]
  %v245 = vld [vmem:[%s4 + $0x1c] sm:$0xf]
  %v246 = vld [vmem:[%s4 + $0x20] sm:$0xf]
  %v247 = vld [vmem:[%s4 + $0x24] sm:$0xf]
  %v248 = vld [vmem:[%s4 + $0x28] sm:$0xf]
  %v249 = vld [vmem:[%s4 + $0x2c] sm:$0xf]
  %v250 = vld [vmem:[%s4 + $0x30] sm:$0xf]
  %v251 = vld [vmem:[%s4 + $0x34] sm:$0xf]
  %v252 = vld [vmem:[%s4 + $0x38] sm:$0xf]
  %v253 = vld [vmem:[%s4 + $0x3c] sm:$0xf]
  %v258 = vunpack.c.l.b16 %v230
  %v259 = vunpack.c.l.b16 %v231
  %v260 = vunpack.c.l.b16 %v232
  %v261 = vunpack.c.l.b16 %v233
  %v262 = vpack.c.b16 %v259, %v258
  %v263 = vpack.c.b16 %v261, %v260
  %v282 = vunpack.c.l.b16 %v238
  %v283 = vunpack.c.l.b16 %v239
  %v284 = vunpack.c.l.b16 %v240
  %v285 = vunpack.c.l.b16 %v241
  %v286 = vunpack.c.l.b16 %v242
  %v287 = vunpack.c.l.b16 %v243
  %v288 = vunpack.c.l.b16 %v244
  %v289 = vunpack.c.l.b16 %v245
  %v290 = vunpack.c.l.b16 %v246
  %v291 = vunpack.c.l.b16 %v247
  %v292 = vunpack.c.l.b16 %v248
  %v293 = vunpack.c.l.b16 %v249
  %v294 = vunpack.c.l.b16 %v250
  %v295 = vunpack.c.l.b16 %v251
  %v296 = vunpack.c.l.b16 %v252
  %v297 = vunpack.c.l.b16 %v253
  %v298 = vpack.c.b16 %v283, %v282
  %v299 = vpack.c.b16 %v285, %v284
  %v300 = vpack.c.b16 %v287, %v286
  %v301 = vpack.c.b16 %v289, %v288
  %v302 = vpack.c.b16 %v291, %v290
  %v303 = vpack.c.b16 %v293, %v292
  %v304 = vpack.c.b16 %v295, %v294
  %v305 = vpack.c.b16 %v297, %v296
  %314 = vmatpush.bf16.msra.mxu0 %v305
  %315 = vmatpush.bf16.msra.mxu0 %v304
  %316 = vmatpush.bf16.msra.mxu0 %v303
  %317 = vmatpush.bf16.msra.mxu0 %v302
  %318 = vmatpush.bf16.msra.mxu0 %v301
  %319 = vmatpush.bf16.msra.mxu0 %v300
  %320 = vmatpush.bf16.msra.mxu0 %v299
  %321 = vmatpush.bf16.msra.mxu0 %v298
  %322 = vmatmul.bf16.gmra.mxu0 %v262
  %v323 = vpop.f32.mrf.mxu0
  %v324 = vadd.f32 0.0, %v323
  %v325 = vpop.f32.mrf.mxu0
  %v326 = vadd.f32 0.0, %v325
  %327 = vmatmul.bf16.gmra.mxu0 %v263
  %v328 = vpop.f32.mrf.mxu0
  %v329 = vadd.f32 0.0, %v328
  %v330 = vpop.f32.mrf.mxu0
  %v331 = vadd.f32 0.0, %v330
  %332 = vdwg.mxu0
  %vm333 = vcmask 7168
  %334 = vst.msk [vmem:[%s9] sm:$0xff] %vm333, %v324
  %335 = vst.msk [vmem:[%s9 + $0x8] sm:$0xff] %vm333, %v326
  %336 = vst.msk [vmem:[%s9 + $0x10] sm:$0xff] %vm333, %v329
  %337 = vst.msk [vmem:[%s9 + $0x18] sm:$0xff] %vm333, %v331
  %v338 = vld [vmem:[%s3] sm:$0x1]
  %339 = vmatpush.bf16.xpose.msra.mxu0 0
  %340 = vmatpush.bf16.xpose.msra.mxu0 0
  %341 = vmatpush.bf16.xpose.msra.mxu0 0
  %342 = vmatpush.bf16.xpose.msra.mxu0 0
  %343 = vmatpush.bf16.xpose.msra.mxu0 0
  %344 = vmatpush.bf16.xpose.msra.mxu0 0
  %345 = vmatpush.bf16.xpose.msra.mxu0 %v263
  %346 = vmatpush.bf16.xpose.msra.mxu0 %v262
  %347 = vmatmul.bf16.gmra.mxu0 %v338
  %v348 = vpop.f32.mrf.mxu0
  %v349 = vadd.f32 0.0, %v348
  %v350 = vpop.f32.mrf.mxu0
  %351 = vdwg.mxu0
  %vm352 = vcmask 253952
  %353 = vst.msk [vmem:[%s8] sm:$0x1] %vm352, %v349
  // Predicated region
  $region30: #{gat_forward.6} parent=0 // pred_check
    _
  $region31: #{gat_forward.6} parent=0 // pred_check_branch
    %355 = sbr.rel (0) target = $region33
  $region32: #{gat_forward.6} parent=0 // pred_region
    _
  $region33: #{gat_forward.6} parent=0 // pred_fallthru
    _
  // Predicated region
  $region34: #{gat_forward.6} parent=0 // pred_check
    _
  $region35: #{gat_forward.6} parent=0 // pred_check_branch
    %357 = sbr.rel (0) target = $region37
  $region36: #{gat_forward.6} parent=0 // pred_region
    _
  $region37: #{gat_forward.6} parent=0 // pred_fallthru
    _
  // Predicated region
  $region38: #{gat_forward.6} parent=0 // pred_check
    _
  $region39: #{gat_forward.6} parent=0 // pred_check_branch
    %359 = sbr.rel (0) target = $region41
  $region40: #{gat_forward.6} parent=0 // pred_region
    _
  $region41: #{gat_forward.6} parent=0 // pred_fallthru
    _
  // Predicated region
  $region42: #{gat_forward.6} parent=0 // pred_check
    _
  $region43: #{gat_forward.6} parent=0 // pred_check_branch
    %361 = sbr.rel (0) target = $region45
  $region44: #{gat_forward.6} parent=0 // pred_region
    _
  $region45: #{gat_forward.6} parent=0 // pred_fallthru
    _
  // Predicated region
  $region46: #{gat_forward.6} parent=0 // pred_check
    _
  $region47: #{gat_forward.6} parent=0 // pred_check_branch
    %363 = sbr.rel (0) target = $region49
  $region48: #{gat_forward.6} parent=0 // pred_region
    _
  $region49: #{gat_forward.6} parent=0 // pred_fallthru
    _
  // Predicated region
  $region50: #{gat_forward.6} parent=0 // pred_check
    _
  $region51: #{gat_forward.6} parent=0 // pred_check_branch
    %365 = sbr.rel (0) target = $region53
  $region52: #{gat_forward.6} parent=0 // pred_region
    _
  $region53: #{gat_forward.6} parent=0 // pred_fallthru
    _

// kernel: gat_forward.5
$region0: #{gat_forward.5}
  #allocation0 [shape = 'u32[]', space=smem, size = 0x4, offset = 0x4, fixed_abs, tag = 'smem constant byte address 0x4 - core index']
  #allocation1 [shape = 'u32[72,128]{1,0:T(1,128)}', space=vmem, size = 0x9000, scoped, tag = 'internal scratch']
  %s0 = inlined_call_operand.vmem [shape: bf16[32,128], index: 0, kind: input, shape index: {}]
  %s1 = inlined_call_operand.vmem [shape: f32[1,32], index: 1, kind: input, shape index: {}]
  %s2 = inlined_call_operand.vmem [shape: f32[32,1], index: 2, kind: input, shape index: {}]
  %s3 = inlined_call_operand.vmem [shape: s8[32,32], index: 3, kind: input, shape index: {}]
  %s4 = inlined_call_operand.vmem [shape: f32[1,128], index: 4, kind: input, shape index: {}]
  %s5 = inlined_call_operand.vmem [shape: f32[32,128], index: 5, kind: output, shape index: {}]
  %s6 = sld [smem:[#allocation0]]
  $region30: #{gat_forward.5} parent=0
    _
  %s8 = ssub.s32 1, %s6
  %s9 = scalar_select 0, %s8, %s6
  // Predicated region
  $region2: #{gat_forward.5} parent=0 // pred_check
    _
  $region3: #{gat_forward.5} parent=0 // pred_check_branch
    %11 = sbr.rel (0) target = $region5
  $region4: #{gat_forward.5} parent=0 // pred_region
    _
  $region5: #{gat_forward.5} parent=0 // pred_fallthru
    _
  // Predicated region
  $region6: #{gat_forward.5} parent=0 // pred_check
    _
  $region7: #{gat_forward.5} parent=0 // pred_check_branch
    %13 = sbr.rel (0) target = $region9
  $region8: #{gat_forward.5} parent=0 // pred_region
    _
  $region9: #{gat_forward.5} parent=0 // pred_fallthru
    _
  // Predicated region
  $region10: #{gat_forward.5} parent=0 // pred_check
    _
  $region11: #{gat_forward.5} parent=0 // pred_check_branch
    %15 = sbr.rel (0) target = $region13
  $region12: #{gat_forward.5} parent=0 // pred_region
    _
  $region13: #{gat_forward.5} parent=0 // pred_fallthru
    _
  // Predicated region
  $region14: #{gat_forward.5} parent=0 // pred_check
    _
  $region15: #{gat_forward.5} parent=0 // pred_check_branch
    %17 = sbr.rel (0) target = $region17
  $region16: #{gat_forward.5} parent=0 // pred_region
    _
  $region17: #{gat_forward.5} parent=0 // pred_fallthru
    _
  // Predicated region
  $region18: #{gat_forward.5} parent=0 // pred_check
    _
  $region19: #{gat_forward.5} parent=0 // pred_check_branch
    %19 = sbr.rel (0) target = $region21
  $region20: #{gat_forward.5} parent=0 // pred_region
    _
  $region21: #{gat_forward.5} parent=0 // pred_fallthru
    _
  %v23 = vld [vmem:[%s2] sm:$0xff]
  %v24 = vld [vmem:[%s2 + $0x8] sm:$0xff]
  %v25 = vld [vmem:[%s2 + $0x10] sm:$0xff]
  %v26 = vld [vmem:[%s2 + $0x18] sm:$0xff]
  %v27 = vld [vmem:[%s1] sm:$0x1]
  %29 = vset.pattern.permute.xlu0 0
  %30 = vperm.xlu0 %29, %v23
  %v31 = vpop.permute.xlu0 %30
  %34 = vset.pattern.permute.xlu0 0
  %35 = vperm.xlu0 %34, %v24
  %v36 = vpop.permute.xlu0 %35
  %39 = vset.pattern.permute.xlu0 0
  %40 = vperm.xlu0 %39, %v25
  %v41 = vpop.permute.xlu0 %40
  %44 = vset.pattern.permute.xlu0 0
  %45 = vperm.xlu0 %44, %v26
  %v46 = vpop.permute.xlu0 %45
  %v49 = vperm.slane %v27, 0
  %v51 = vadd.f32 %v31, %v49
  %v52 = vadd.f32 %v36, %v49
  %v53 = vadd.f32 %v41, %v49
  %v54 = vadd.f32 %v46, %v49
  %v55 = vmul.f32 %v51, 0.2
  %v56 = vmul.f32 %v52, 0.2
  %v57 = vmul.f32 %v53, 0.2
  %v58 = vmul.f32 %v54, 0.2
  %v59 = vmax.f32 %v51, %v55
  %v60 = vmax.f32 %v52, %v56
  %v61 = vmax.f32 %v53, %v57
  %v62 = vmax.f32 %v54, %v58
  %v63 = vld [vmem:[%s3] sm:$0xff]
  %vm64 = vnez %v63
  %v65 = vsel %vm64, 16843009, 0
  %v66 = vunpack.c.0.s8 %v65
  %v67 = vunpack.c.1.s8 %v65
  %v68 = vunpack.c.2.s8 %v65
  %v69 = vunpack.c.3.s8 %v65
  %v70 = vpack.c.b16 %v66, %v66
  %v71 = vpack.c.b8 %v70, %v70
  %v72 = vpack.c.b16 %v67, %v67
  %v73 = vpack.c.b8 %v72, %v72
  %v74 = vpack.c.b16 %v68, %v68
  %v75 = vpack.c.b8 %v74, %v74
  %v76 = vpack.c.b16 %v69, %v69
  %v77 = vpack.c.b8 %v76, %v76
  %vm78 = vnez %v71
  %vm79 = vnez %v73
  %vm80 = vnez %v75
  %vm81 = vnez %v77
  %v82 = vsel %vm78, 16843009, 0
  %v83 = vsel %vm79, 16843009, 0
  %v84 = vsel %vm80, 16843009, 0
  %v85 = vsel %vm81, 16843009, 0
  %v86 = vunpack.c.0.s8 %v82
  %v87 = vunpack.c.0.s8 %v83
  %v88 = vunpack.c.0.s8 %v84
  %v89 = vunpack.c.0.s8 %v85
  %vm90 = vcmp.ne.s32.totalorder %v86, 0
  %vm91 = vcmp.ne.s32.totalorder %v87, 0
  %vm92 = vcmp.ne.s32.totalorder %v88, 0
  %vm93 = vcmp.ne.s32.totalorder %v89, 0
  %v94 = vsel %vm90, %v59, -1e+30
  %v95 = vsel %vm91, %v60, -1e+30
  %v96 = vsel %vm92, %v61, -1e+30
  %v97 = vsel %vm93, %v62, -1e+30
  %vm98 = vcmask 261120
  %v99 = vsel %vm98, %v94, -inf
  %100 = vmax.xlane.f32.xlu0 %v99
  %v101 = vpop.xlane.xlu0 %100
  %v102 = vsel %vm98, %v95, -inf
  %103 = vmax.xlane.f32.xlu0 %v102
  %v104 = vpop.xlane.xlu0 %103
  %v105 = vsel %vm98, %v96, -inf
  %106 = vmax.xlane.f32.xlu0 %v105
  %v107 = vpop.xlane.xlu0 %106
  %v108 = vsel %vm98, %v97, -inf
  %109 = vmax.xlane.f32.xlu0 %v108
  %v110 = vpop.xlane.xlu0 %109
  %v111 = vsub.f32 %v94, %v101
  %v112 = vsub.f32 %v95, %v104
  %v113 = vsub.f32 %v96, %v107
  %v114 = vsub.f32 %v97, %v110
  %v115 = vmul.f32 %v111, 1.442695
  %v116 = vpow.pop %v115
  %v117 = vmul.f32 %v112, 1.442695
  %v118 = vpow.pop %v117
  %v119 = vmul.f32 %v113, 1.442695
  %v120 = vpow.pop %v119
  %v121 = vmul.f32 %v114, 1.442695
  %v122 = vpow.pop %v121
  %v123 = vsel %vm98, %v116, 0.0
  %124 = vadd.xlane.f32.xlu0 %v123
  %v125 = vpop.xlane.xlu0 %124
  %v126 = vsel %vm98, %v118, 0.0
  %127 = vadd.xlane.f32.xlu0 %v126
  %v128 = vpop.xlane.xlu0 %127
  %v129 = vsel %vm98, %v120, 0.0
  %130 = vadd.xlane.f32.xlu0 %v129
  %v131 = vpop.xlane.xlu0 %130
  %v132 = vsel %vm98, %v122, 0.0
  %133 = vadd.xlane.f32.xlu0 %v132
  %v134 = vpop.xlane.xlu0 %133
  %v135 = vpack.c.bf16 %v118, %v116
  %v136 = vpack.c.bf16 %v122, %v120
  %v137 = vld [vmem:[%s0] sm:$0xf]
  %v138 = vld [vmem:[%s0 + $0x4] sm:$0xf]
  %v139 = vld [vmem:[%s0 + $0x8] sm:$0xf]
  %v140 = vld [vmem:[%s0 + $0xc] sm:$0xf]
  %v145 = vunpack.c.l.b16 %v137
  %v146 = vunpack.c.l.b16 %v138
  %v147 = vunpack.c.l.b16 %v139
  %v148 = vunpack.c.l.b16 %v140
  %v149 = vpack.c.b16 %v146, %v145
  %v150 = vpack.c.b16 %v148, %v147
  %v154 = vsel %vm98, %v135, 0
  %v157 = vsel %vm98, %v136, 0
  %159 = vmatpush.bf16.msra.mxu0 0
  %160 = vmatpush.bf16.msra.mxu0 0
  %161 = vmatpush.bf16.msra.mxu0 0
  %162 = vmatpush.bf16.msra.mxu0 0
  %163 = vmatpush.bf16.msra.mxu0 0
  %164 = vmatpush.bf16.msra.mxu0 0
  %165 = vmatpush.bf16.msra.mxu0 %v150
  %166 = vmatpush.bf16.msra.mxu0 %v149
  %167 = vmatmul.bf16.gmra.mxu0 %v154
  %v168 = vpop.f32.mrf.mxu0
  %v169 = vadd.f32 0.0, %v168
  %v170 = vpop.f32.mrf.mxu0
  %v171 = vadd.f32 0.0, %v170
  %172 = vmatmul.bf16.gmra.mxu0 %v157
  %v173 = vpop.f32.mrf.mxu0
  %v174 = vadd.f32 0.0, %v173
  %v175 = vpop.f32.mrf.mxu0
  %v176 = vadd.f32 0.0, %v175
  %177 = vdwg.mxu0
  %v178 = vrcp.pop %v125
  %v179 = vrcp.pop %v128
  %v180 = vrcp.pop %v131
  %v181 = vrcp.pop %v134
  %v182 = vmul.f32 %v169, %v178
  %v183 = vmul.f32 %v171, %v179
  %v184 = vmul.f32 %v174, %v180
  %v185 = vmul.f32 %v176, %v181
  %v186 = vld [vmem:[%s4] sm:$0x1]
  %v188 = vperm.slane %v186, 0
  %v190 = vadd.f32 %v182, %v188
  %v191 = vadd.f32 %v183, %v188
  %v192 = vadd.f32 %v184, %v188
  %v193 = vadd.f32 %v185, %v188
  %194 = vst [vmem:[%s5] sm:$0xff] %v190
  %195 = vst [vmem:[%s5 + $0x8] sm:$0xff] %v191
  %196 = vst [vmem:[%s5 + $0x10] sm:$0xff] %v192
  %197 = vst [vmem:[%s5 + $0x18] sm:$0xff] %v193
  // Predicated region
  $region22: #{gat_forward.5} parent=0 // pred_check
    _
  $region23: #{gat_forward.5} parent=0 // pred_check_branch
    %199 = sbr.rel (0) target = $region25
  $region24: #{gat_forward.5} parent=0 // pred_region
    _
  $region25: #{gat_forward.5} parent=0 // pred_fallthru
    _
  // Predicated region
  $region26: #{gat_forward.5} parent=0 // pred_check
    _
  $region27: #{gat_forward.5} parent=0 // pred_check_branch
    %201 = sbr.rel (0) target = $region29
  $region28: #{gat_forward.5} parent=0 // pred_region
    _
  $region29: #{gat_forward.5} parent=0 // pred_fallthru
    _

// kernel: gat_forward.7
$region0: #{gat_forward.7}
  #allocation0 [shape = 'u32[]', space=smem, size = 0x4, offset = 0x4, fixed_abs, tag = 'smem constant byte address 0x4 - core index']
  #allocation1 [shape = 'u32[72,128]{1,0:T(1,128)}', space=vmem, size = 0x9000, scoped, tag = 'internal scratch']
  %s0 = inlined_call_operand.vmem [shape: bf16[32,128], index: 0, kind: input, shape index: {}]
  %s1 = inlined_call_operand.vmem [shape: f32[1,32], index: 1, kind: input, shape index: {}]
  %s2 = inlined_call_operand.vmem [shape: f32[32,1], index: 2, kind: input, shape index: {}]
  %s3 = inlined_call_operand.vmem [shape: s8[32,32], index: 3, kind: input, shape index: {}]
  %s4 = inlined_call_operand.vmem [shape: f32[1,128], index: 4, kind: input, shape index: {}]
  %s5 = inlined_call_operand.vmem [shape: f32[32,128], index: 5, kind: input, shape index: {}]
  %s6 = inlined_call_operand.vmem [shape: f32[1,128], index: 6, kind: input, shape index: {}]
  %s7 = inlined_call_operand.vmem [shape: f32[1,128], index: 7, kind: input, shape index: {}]
  %s8 = inlined_call_operand.vmem [shape: bf16[128,128], index: 8, kind: input, shape index: {}]
  %s9 = inlined_call_operand.vmem [shape: f32[1,128], index: 9, kind: input, shape index: {}]
  %s10 = inlined_call_operand.vmem [shape: f32[32,128], index: 10, kind: output, shape index: {}]
  %s11 = sld [smem:[#allocation0]]
  $region50: #{gat_forward.7} parent=0
    _
  %s13 = ssub.s32 1, %s11
  %s14 = scalar_select 0, %s13, %s11
  // Predicated region
  $region2: #{gat_forward.7} parent=0 // pred_check
    _
  $region3: #{gat_forward.7} parent=0 // pred_check_branch
    %16 = sbr.rel (0) target = $region5
  $region4: #{gat_forward.7} parent=0 // pred_region
    _
  $region5: #{gat_forward.7} parent=0 // pred_fallthru
    _
  // Predicated region
  $region6: #{gat_forward.7} parent=0 // pred_check
    _
  $region7: #{gat_forward.7} parent=0 // pred_check_branch
    %18 = sbr.rel (0) target = $region9
  $region8: #{gat_forward.7} parent=0 // pred_region
    _
  $region9: #{gat_forward.7} parent=0 // pred_fallthru
    _
  // Predicated region
  $region10: #{gat_forward.7} parent=0 // pred_check
    _
  $region11: #{gat_forward.7} parent=0 // pred_check_branch
    %20 = sbr.rel (0) target = $region13
  $region12: #{gat_forward.7} parent=0 // pred_region
    _
  $region13: #{gat_forward.7} parent=0 // pred_fallthru
    _
  // Predicated region
  $region14: #{gat_forward.7} parent=0 // pred_check
    _
  $region15: #{gat_forward.7} parent=0 // pred_check_branch
    %22 = sbr.rel (0) target = $region17
  $region16: #{gat_forward.7} parent=0 // pred_region
    _
  $region17: #{gat_forward.7} parent=0 // pred_fallthru
    _
  // Predicated region
  $region18: #{gat_forward.7} parent=0 // pred_check
    _
  $region19: #{gat_forward.7} parent=0 // pred_check_branch
    %24 = sbr.rel (0) target = $region21
  $region20: #{gat_forward.7} parent=0 // pred_region
    _
  $region21: #{gat_forward.7} parent=0 // pred_fallthru
    _
  // Predicated region
  $region22: #{gat_forward.7} parent=0 // pred_check
    _
  $region23: #{gat_forward.7} parent=0 // pred_check_branch
    %26 = sbr.rel (0) target = $region25
  $region24: #{gat_forward.7} parent=0 // pred_region
    _
  $region25: #{gat_forward.7} parent=0 // pred_fallthru
    _
  // Predicated region
  $region26: #{gat_forward.7} parent=0 // pred_check
    _
  $region27: #{gat_forward.7} parent=0 // pred_check_branch
    %28 = sbr.rel (0) target = $region29
  $region28: #{gat_forward.7} parent=0 // pred_region
    _
  $region29: #{gat_forward.7} parent=0 // pred_fallthru
    _
  // Predicated region
  $region30: #{gat_forward.7} parent=0 // pred_check
    _
  $region31: #{gat_forward.7} parent=0 // pred_check_branch
    %30 = sbr.rel (0) target = $region33
  $region32: #{gat_forward.7} parent=0 // pred_region
    _
  $region33: #{gat_forward.7} parent=0 // pred_fallthru
    _
  // Predicated region
  $region34: #{gat_forward.7} parent=0 // pred_check
    _
  $region35: #{gat_forward.7} parent=0 // pred_check_branch
    %32 = sbr.rel (0) target = $region37
  $region36: #{gat_forward.7} parent=0 // pred_region
    _
  $region37: #{gat_forward.7} parent=0 // pred_fallthru
    _
  // Predicated region
  $region38: #{gat_forward.7} parent=0 // pred_check
    _
  $region39: #{gat_forward.7} parent=0 // pred_check_branch
    %34 = sbr.rel (0) target = $region41
  $region40: #{gat_forward.7} parent=0 // pred_region
    _
  $region41: #{gat_forward.7} parent=0 // pred_fallthru
    _
  %v38 = vld [vmem:[%s2] sm:$0xff]
  %v39 = vld [vmem:[%s2 + $0x8] sm:$0xff]
  %v40 = vld [vmem:[%s2 + $0x10] sm:$0xff]
  %v41 = vld [vmem:[%s2 + $0x18] sm:$0xff]
  %v42 = vld [vmem:[%s1] sm:$0x1]
  %44 = vset.pattern.permute.xlu0 0
  %45 = vperm.xlu0 %44, %v38
  %v46 = vpop.permute.xlu0 %45
  %49 = vset.pattern.permute.xlu0 0
  %50 = vperm.xlu0 %49, %v39
  %v51 = vpop.permute.xlu0 %50
  %54 = vset.pattern.permute.xlu0 0
  %55 = vperm.xlu0 %54, %v40
  %v56 = vpop.permute.xlu0 %55
  %59 = vset.pattern.permute.xlu0 0
  %60 = vperm.xlu0 %59, %v41
  %v61 = vpop.permute.xlu0 %60
  %v64 = vperm.slane %v42, 0
  %v66 = vadd.f32 %v46, %v64
  %v67 = vadd.f32 %v51, %v64
  %v68 = vadd.f32 %v56, %v64
  %v69 = vadd.f32 %v61, %v64
  %v70 = vmul.f32 %v66, 0.2
  %v71 = vmul.f32 %v67, 0.2
  %v72 = vmul.f32 %v68, 0.2
  %v73 = vmul.f32 %v69, 0.2
  %v74 = vmax.f32 %v66, %v70
  %v75 = vmax.f32 %v67, %v71
  %v76 = vmax.f32 %v68, %v72
  %v77 = vmax.f32 %v69, %v73
  %v78 = vld [vmem:[%s3] sm:$0xff]
  %vm79 = vnez %v78
  %v80 = vsel %vm79, 16843009, 0
  %v81 = vunpack.c.0.s8 %v80
  %v82 = vunpack.c.1.s8 %v80
  %v83 = vunpack.c.2.s8 %v80
  %v84 = vunpack.c.3.s8 %v80
  %v85 = vpack.c.b16 %v81, %v81
  %v86 = vpack.c.b8 %v85, %v85
  %v87 = vpack.c.b16 %v82, %v82
  %v88 = vpack.c.b8 %v87, %v87
  %v89 = vpack.c.b16 %v83, %v83
  %v90 = vpack.c.b8 %v89, %v89
  %v91 = vpack.c.b16 %v84, %v84
  %v92 = vpack.c.b8 %v91, %v91
  %vm93 = vnez %v86
  %vm94 = vnez %v88
  %vm95 = vnez %v90
  %vm96 = vnez %v92
  %v97 = vsel %vm93, 16843009, 0
  %v98 = vsel %vm94, 16843009, 0
  %v99 = vsel %vm95, 16843009, 0
  %v100 = vsel %vm96, 16843009, 0
  %v101 = vunpack.c.0.s8 %v97
  %v102 = vunpack.c.0.s8 %v98
  %v103 = vunpack.c.0.s8 %v99
  %v104 = vunpack.c.0.s8 %v100
  %vm105 = vcmp.ne.s32.totalorder %v101, 0
  %vm106 = vcmp.ne.s32.totalorder %v102, 0
  %vm107 = vcmp.ne.s32.totalorder %v103, 0
  %vm108 = vcmp.ne.s32.totalorder %v104, 0
  %v109 = vsel %vm105, %v74, -1e+30
  %v110 = vsel %vm106, %v75, -1e+30
  %v111 = vsel %vm107, %v76, -1e+30
  %v112 = vsel %vm108, %v77, -1e+30
  %vm113 = vcmask 261120
  %v114 = vsel %vm113, %v109, -inf
  %115 = vmax.xlane.f32.xlu0 %v114
  %v116 = vpop.xlane.xlu0 %115
  %v117 = vsel %vm113, %v110, -inf
  %118 = vmax.xlane.f32.xlu0 %v117
  %v119 = vpop.xlane.xlu0 %118
  %v120 = vsel %vm113, %v111, -inf
  %121 = vmax.xlane.f32.xlu0 %v120
  %v122 = vpop.xlane.xlu0 %121
  %v123 = vsel %vm113, %v112, -inf
  %124 = vmax.xlane.f32.xlu0 %v123
  %v125 = vpop.xlane.xlu0 %124
  %v126 = vsub.f32 %v109, %v116
  %v127 = vsub.f32 %v110, %v119
  %v128 = vsub.f32 %v111, %v122
  %v129 = vsub.f32 %v112, %v125
  %v130 = vmul.f32 %v126, 1.442695
  %v131 = vpow.pop %v130
  %v132 = vmul.f32 %v127, 1.442695
  %v133 = vpow.pop %v132
  %v134 = vmul.f32 %v128, 1.442695
  %v135 = vpow.pop %v134
  %v136 = vmul.f32 %v129, 1.442695
  %v137 = vpow.pop %v136
  %v138 = vsel %vm113, %v131, 0.0
  %139 = vadd.xlane.f32.xlu0 %v138
  %v140 = vpop.xlane.xlu0 %139
  %v141 = vsel %vm113, %v133, 0.0
  %142 = vadd.xlane.f32.xlu0 %v141
  %v143 = vpop.xlane.xlu0 %142
  %v144 = vsel %vm113, %v135, 0.0
  %145 = vadd.xlane.f32.xlu0 %v144
  %v146 = vpop.xlane.xlu0 %145
  %v147 = vsel %vm113, %v137, 0.0
  %148 = vadd.xlane.f32.xlu0 %v147
  %v149 = vpop.xlane.xlu0 %148
  %v150 = vpack.c.bf16 %v133, %v131
  %v151 = vpack.c.bf16 %v137, %v135
  %v152 = vld [vmem:[%s0] sm:$0xf]
  %v153 = vld [vmem:[%s0 + $0x4] sm:$0xf]
  %v154 = vld [vmem:[%s0 + $0x8] sm:$0xf]
  %v155 = vld [vmem:[%s0 + $0xc] sm:$0xf]
  %v160 = vunpack.c.l.b16 %v152
  %v161 = vunpack.c.l.b16 %v153
  %v162 = vunpack.c.l.b16 %v154
  %v163 = vunpack.c.l.b16 %v155
  %v164 = vpack.c.b16 %v161, %v160
  %v165 = vpack.c.b16 %v163, %v162
  %v169 = vsel %vm113, %v150, 0
  %v172 = vsel %vm113, %v151, 0
  %174 = vmatpush.bf16.msra.mxu0 0
  %175 = vmatpush.bf16.msra.mxu0 0
  %176 = vmatpush.bf16.msra.mxu0 0
  %177 = vmatpush.bf16.msra.mxu0 0
  %178 = vmatpush.bf16.msra.mxu0 0
  %179 = vmatpush.bf16.msra.mxu0 0
  %180 = vmatpush.bf16.msra.mxu0 %v165
  %181 = vmatpush.bf16.msra.mxu0 %v164
  %182 = vmatmul.bf16.gmra.mxu0 %v169
  %v183 = vpop.f32.mrf.mxu0
  %v184 = vadd.f32 0.0, %v183
  %v185 = vpop.f32.mrf.mxu0
  %v186 = vadd.f32 0.0, %v185
  %187 = vmatmul.bf16.gmra.mxu0 %v172
  %v188 = vpop.f32.mrf.mxu0
  %v189 = vadd.f32 0.0, %v188
  %v190 = vpop.f32.mrf.mxu0
  %v191 = vadd.f32 0.0, %v190
  %192 = vdwg.mxu0
  %v193 = vrcp.pop %v140
  %v194 = vrcp.pop %v143
  %v195 = vrcp.pop %v146
  %v196 = vrcp.pop %v149
  %v197 = vmul.f32 %v184, %v193
  %v198 = vmul.f32 %v186, %v194
  %v199 = vmul.f32 %v189, %v195
  %v200 = vmul.f32 %v191, %v196
  %v201 = vld [vmem:[%s4] sm:$0x1]
  %v203 = vperm.slane %v201, 0
  %v205 = vadd.f32 %v197, %v203
  %v206 = vadd.f32 %v198, %v203
  %v207 = vadd.f32 %v199, %v203
  %v208 = vadd.f32 %v200, %v203
  %v209 = vld [vmem:[%s5] sm:$0xff]
  %v210 = vld [vmem:[%s5 + $0x8] sm:$0xff]
  %v211 = vld [vmem:[%s5 + $0x10] sm:$0xff]
  %v212 = vld [vmem:[%s5 + $0x18] sm:$0xff]
  %v213 = vadd.f32 %v205, %v209
  %v214 = vadd.f32 %v206, %v210
  %v215 = vadd.f32 %v207, %v211
  %v216 = vadd.f32 %v208, %v212
  %v217 = vld [vmem:[%s6] sm:$0x1]
  %v218 = vld [vmem:[%s7] sm:$0x1]
  %219 = vadd.xlane.f32.xlu0 %v213
  %v220 = vpop.xlane.xlu0 %219
  %221 = vadd.xlane.f32.xlu0 %v214
  %v222 = vpop.xlane.xlu0 %221
  %223 = vadd.xlane.f32.xlu0 %v215
  %v224 = vpop.xlane.xlu0 %223
  %225 = vadd.xlane.f32.xlu0 %v216
  %v226 = vpop.xlane.xlu0 %225
  %v227 = vrcp.pop 128.0
  %v228 = vmul.f32 128.0, %v227
  %v229 = vsub.f32 1.0, %v228
  %v230 = vmul.f32 %v227, %v229
  %v231 = vadd.f32 %v227, %v230
  %vm232 = vweird.f32 %v227
  %v233 = vsel %vm232, %v227, %v231
  %v234 = vmul.f32 %v220, %v233
  %v235 = vmul.f32 %v222, %v233
  %v236 = vmul.f32 %v224, %v233
  %v237 = vmul.f32 %v226, %v233
  %v238 = vsub.f32 %v213, %v234
  %v239 = vsub.f32 %v214, %v235
  %v240 = vsub.f32 %v215, %v236
  %v241 = vsub.f32 %v216, %v237
  %v242 = vmul.f32 %v238, %v238
  %v243 = vmul.f32 %v239, %v239
  %v244 = vmul.f32 %v240, %v240
  %v245 = vmul.f32 %v241, %v241
  %246 = vadd.xlane.f32.xlu0 %v242
  %v247 = vpop.xlane.xlu0 %246
  %248 = vadd.xlane.f32.xlu0 %v243
  %v249 = vpop.xlane.xlu0 %248
  %250 = vadd.xlane.f32.xlu0 %v244
  %v251 = vpop.xlane.xlu0 %250
  %252 = vadd.xlane.f32.xlu0 %v245
  %v253 = vpop.xlane.xlu0 %252
  %v254 = vmul.f32 %v247, %v233
  %v255 = vmul.f32 %v249, %v233
  %v256 = vmul.f32 %v251, %v233
  %v257 = vmul.f32 %v253, %v233
  %v258 = vadd.f32 %v254, 1e-05
  %v259 = vadd.f32 %v255, 1e-05
  %v260 = vadd.f32 %v256, 1e-05
  %v261 = vadd.f32 %v257, 1e-05
  %v262 = vrsqrt.pop %v258
  %v263 = vmul.f32 %v262, %v258
  %v264 = vmul.f32 %v263, %v262
  %v265 = vmul.f32 0.5, %v264
  %v266 = vsub.f32 1.5, %v265
  %v267 = vmul.f32 %v262, %v266
  %vm268 = vweird.f32 %v258
  %vm269 = vweird.f32 %v262
  %vm270 = vmor %vm268, %vm269
  %v271 = vsel %vm270, %v262, %v267
  %v272 = vrsqrt.pop %v259
  %v273 = vmul.f32 %v272, %v259
  %v274 = vmul.f32 %v273, %v272
  %v275 = vmul.f32 0.5, %v274
  %v276 = vsub.f32 1.5, %v275
  %v277 = vmul.f32 %v272, %v276
  %vm278 = vweird.f32 %v259
  %vm279 = vweird.f32 %v272
  %vm280 = vmor %vm278, %vm279
  %v281 = vsel %vm280, %v272, %v277
  %v282 = vrsqrt.pop %v260
  %v283 = vmul.f32 %v282, %v260
  %v284 = vmul.f32 %v283, %v282
  %v285 = vmul.f32 0.5, %v284
  %v286 = vsub.f32 1.5, %v285
  %v287 = vmul.f32 %v282, %v286
  %vm288 = vweird.f32 %v260
  %vm289 = vweird.f32 %v282
  %vm290 = vmor %vm288, %vm289
  %v291 = vsel %vm290, %v282, %v287
  %v292 = vrsqrt.pop %v261
  %v293 = vmul.f32 %v292, %v261
  %v294 = vmul.f32 %v293, %v292
  %v295 = vmul.f32 0.5, %v294
  %v296 = vsub.f32 1.5, %v295
  %v297 = vmul.f32 %v292, %v296
  %vm298 = vweird.f32 %v261
  %vm299 = vweird.f32 %v292
  %vm300 = vmor %vm298, %vm299
  %v301 = vsel %vm300, %v292, %v297
  %v302 = vmul.f32 %v238, %v271
  %v303 = vmul.f32 %v239, %v281
  %v304 = vmul.f32 %v240, %v291
  %v305 = vmul.f32 %v241, %v301
  %v307 = vperm.slane %v217, 0
  %v309 = vmul.f32 %v302, %v307
  %v310 = vmul.f32 %v303, %v307
  %v311 = vmul.f32 %v304, %v307
  %v312 = vmul.f32 %v305, %v307
  %v314 = vperm.slane %v218, 0
  %v316 = vadd.f32 %v309, %v314
  %v317 = vadd.f32 %v310, %v314
  %v318 = vadd.f32 %v311, %v314
  %v319 = vadd.f32 %v312, %v314
  %v320 = vmax.f32 %v316, 0.0
  %v321 = vmax.f32 %v317, 0.0
  %v322 = vmax.f32 %v318, 0.0
  %v323 = vmax.f32 %v319, 0.0
  %v324 = vld [vmem:[%s8] sm:$0xf]
  %v325 = vld [vmem:[%s8 + $0x4] sm:$0xf]
  %v326 = vld [vmem:[%s8 + $0x8] sm:$0xf]
  %v327 = vld [vmem:[%s8 + $0xc] sm:$0xf]
  %v328 = vld [vmem:[%s8 + $0x10] sm:$0xf]
  %v329 = vld [vmem:[%s8 + $0x14] sm:$0xf]
  %v330 = vld [vmem:[%s8 + $0x18] sm:$0xf]
  %v331 = vld [vmem:[%s8 + $0x1c] sm:$0xf]
  %v332 = vld [vmem:[%s8 + $0x20] sm:$0xf]
  %v333 = vld [vmem:[%s8 + $0x24] sm:$0xf]
  %v334 = vld [vmem:[%s8 + $0x28] sm:$0xf]
  %v335 = vld [vmem:[%s8 + $0x2c] sm:$0xf]
  %v336 = vld [vmem:[%s8 + $0x30] sm:$0xf]
  %v337 = vld [vmem:[%s8 + $0x34] sm:$0xf]
  %v338 = vld [vmem:[%s8 + $0x38] sm:$0xf]
  %v339 = vld [vmem:[%s8 + $0x3c] sm:$0xf]
  %v340 = vpack.c.bf16 %v321, %v320
  %v341 = vpack.c.bf16 %v323, %v322
  %v342 = vld [vmem:[%s9] sm:$0x1]
  %v344 = vperm.slane %v342, 0
  %v362 = vunpack.c.l.b16 %v324
  %v363 = vunpack.c.l.b16 %v325
  %v364 = vunpack.c.l.b16 %v326
  %v365 = vunpack.c.l.b16 %v327
  %v366 = vunpack.c.l.b16 %v328
  %v367 = vunpack.c.l.b16 %v329
  %v368 = vunpack.c.l.b16 %v330
  %v369 = vunpack.c.l.b16 %v331
  %v370 = vunpack.c.l.b16 %v332
  %v371 = vunpack.c.l.b16 %v333
  %v372 = vunpack.c.l.b16 %v334
  %v373 = vunpack.c.l.b16 %v335
  %v374 = vunpack.c.l.b16 %v336
  %v375 = vunpack.c.l.b16 %v337
  %v376 = vunpack.c.l.b16 %v338
  %v377 = vunpack.c.l.b16 %v339
  %v378 = vpack.c.b16 %v363, %v362
  %v379 = vpack.c.b16 %v365, %v364
  %v380 = vpack.c.b16 %v367, %v366
  %v381 = vpack.c.b16 %v369, %v368
  %v382 = vpack.c.b16 %v371, %v370
  %v383 = vpack.c.b16 %v373, %v372
  %v384 = vpack.c.b16 %v375, %v374
  %v385 = vpack.c.b16 %v377, %v376
  %394 = vmatpush.bf16.msra.mxu0 %v385
  %395 = vmatpush.bf16.msra.mxu0 %v384
  %396 = vmatpush.bf16.msra.mxu0 %v383
  %397 = vmatpush.bf16.msra.mxu0 %v382
  %398 = vmatpush.bf16.msra.mxu0 %v381
  %399 = vmatpush.bf16.msra.mxu0 %v380
  %400 = vmatpush.bf16.msra.mxu0 %v379
  %401 = vmatpush.bf16.msra.mxu0 %v378
  %402 = vmatmul.bf16.gmra.mxu0 %v340
  %v403 = vpop.f32.mrf.mxu0
  %v404 = vadd.f32 %v344, %v403
  %v405 = vpop.f32.mrf.mxu0
  %v406 = vadd.f32 %v344, %v405
  %407 = vmatmul.bf16.gmra.mxu0 %v341
  %v408 = vpop.f32.mrf.mxu0
  %v409 = vadd.f32 %v344, %v408
  %v410 = vpop.f32.mrf.mxu0
  %v411 = vadd.f32 %v344, %v410
  %412 = vdwg.mxu0
  %413 = vst [vmem:[%s10] sm:$0xff] %v404
  %414 = vst [vmem:[%s10 + $0x8] sm:$0xff] %v406
  %415 = vst [vmem:[%s10 + $0x10] sm:$0xff] %v409
  %416 = vst [vmem:[%s10 + $0x18] sm:$0xff] %v411
  // Predicated region
  $region42: #{gat_forward.7} parent=0 // pred_check
    _
  $region43: #{gat_forward.7} parent=0 // pred_check_branch
    %418 = sbr.rel (0) target = $region45
  $region44: #{gat_forward.7} parent=0 // pred_region
    _
  $region45: #{gat_forward.7} parent=0 // pred_fallthru
    _
  // Predicated region
  $region46: #{gat_forward.7} parent=0 // pred_check
    _
  $region47: #{gat_forward.7} parent=0 // pred_check_branch
    %420 = sbr.rel (0) target = $region49
  $region48: #{gat_forward.7} parent=0 // pred_region
    _
  $region49: #{gat_forward.7} parent=0 // pred_fallthru
    _

</llo_original>
